<compile_context>
chip_gen: v7x
topology: tpu7x:2x2x1
jax: 0.10.0
libtpu: 0.0.40
codegen_flags: <defaults>
</compile_context>

<pallas_src>
import functools

import jax
import jax.numpy as jnp
from jax import lax
from jax.experimental import pallas as pl
from jax.experimental.pallas import tpu as pltpu


def _vmem_capacity_bytes():
    """Per-core VMEM capacity; falls back to the smallest generation (v7x)."""
    try:
        return int(pltpu.get_tpu_info().vmem_capacity_bytes)
    except Exception:
        return 64 * 1024 * 1024


def _dw_pw_compute(read_channel, wdw_ref, bdw_ref, wpw_ref, bpw_ref, *,
                   cin, cout, k, stride, tile_h, wo):
    """Fused depthwise KxK + pointwise 1x1 over one halo'd row slab.

    read_channel(ci) -> (rows, Wp) slab of input rows for channel ci.
    Weights/biases are flat f32 SMEM refs (scalar reads -> scalar*vreg FMAs on
    the VPU).  Returns a list of Cout (tile_h, wo) f32 accumulators.
    """
    accs = [None] * cout
    for ci in range(cin):
        x_c = read_channel(ci).astype(jnp.float32)      # one upcast per channel

        if stride == 1:
            def patch(kh, kw, x_c=x_c):
                return x_c[kh:kh + tile_h, kw:kw + wo]
        else:
            # Decimate lanes once per kw offset; reuse across kh (sublane step).
            # TODO(synk): strided lane slices are untested on all generations;
            # revisit if a strided NASNet cell is exercised.
            cols = [x_c[:, kw:kw + (wo - 1) * stride + 1:stride]
                    for kw in range(k)]
            def patch(kh, kw, cols=cols):
                return cols[kw][kh:kh + (tile_h - 1) * stride + 1:stride, :]

        dw = None
        for kh in range(k):
            for kw in range(k):
                term = patch(kh, kw) * wdw_ref[ci * k * k + kh * k + kw]
                dw = term if dw is None else dw + term
        dw = dw + bdw_ref[ci]                            # (tile_h, wo) f32

        # Interleaved pointwise accumulation keeps the live set small.
        for co in range(cout):
            t = dw * wpw_ref[co * cin + ci]
            accs[co] = t if accs[co] is None else accs[co] + t

    return [accs[co] + bpw_ref[co] for co in range(cout)]


def _store_rows(o_ref, accs, *, tile_h, wo):
    # o_ref: (1, Cout, tile_h*wo) lane-dense block -> the HBM writeback DMA is
    # dense regardless of how we fill it here.
    out = jnp.stack(accs, axis=0).astype(o_ref.dtype)    # (Cout, tile_h, wo)
    for r in range(tile_h):
        o_ref[0, :, r * wo:(r + 1) * wo] = out[:, r, :]


def _sepconv_kernel_resident(x_ref, wdw_ref, bdw_ref, wpw_ref, bpw_ref, o_ref,
                             *, cin, cout, k, stride, ho, wo):
    """Primary path: one grid step = one whole padded image (auto-pipelined)."""
    accs = _dw_pw_compute(lambda ci: x_ref[0, ci], wdw_ref, bdw_ref, wpw_ref,
                          bpw_ref, cin=cin, cout=cout, k=k, stride=stride,
                          tile_h=ho, wo=wo)
    _store_rows(o_ref, accs, tile_h=ho, wo=wo)


def _sepconv_kernel_rowtiled(x_hbm, wdw_ref, bdw_ref, wpw_ref, bpw_ref, o_ref,
                             xbuf, sem, *, cin, cout, k, stride, tile_h, wo,
                             n_h_tiles):
    """Fallback for large images: halo'd row tiles, manual double buffering."""
    n = pl.program_id(0)
    h = pl.program_id(1)

    rows = (tile_h - 1) * stride + k
    row_step = tile_h * stride

    def tile_copy(h_idx, slot):
        row0 = h_idx * row_step
        if not isinstance(row0, int):
            row0 = pl.multiple_of(row0, row_step)
        return pltpu.make_async_copy(
            x_hbm.at[n, :, pl.ds(row0, rows), :], xbuf.at[slot], sem.at[slot])

    slot = h % 2

    # Prime at the first row tile of each batch element.  No cross-batch
    # prefetch: with batch megacore-"parallel" the next batch on this core is
    # unknown, so a speculative copy could hand the next wait the wrong rows.
    @pl.when(h == 0)
    def _prime():
        tile_copy(0, 0).start()

    tile_copy(h, slot).wait()

    @pl.when(h + 1 < n_h_tiles)
    def _prefetch_next():
        tile_copy(h + 1, 1 - slot).start()

    accs = _dw_pw_compute(lambda ci: xbuf[slot, ci], wdw_ref, bdw_ref, wpw_ref,
                          bpw_ref, cin=cin, cout=cout, k=k, stride=stride,
                          tile_h=tile_h, wo=wo)
    _store_rows(o_ref, accs, tile_h=tile_h, wo=wo)


def separable_conv2d(x, dw_weight, dw_bias, pw_weight, pw_bias,
                     *, kernel_size, stride=1, padding=0):
    """x: (N, Cin, H, W) NCHW.  PyTorch weight conventions:
       dw_weight (Cin, 1, K, K), dw_bias (Cin,),
       pw_weight (Cout, Cin, 1, 1), pw_bias (Cout,)."""
    N, Cin, H, W = x.shape
    Cout = pw_weight.shape[0]
    K = kernel_size

    Ho = (H + 2 * padding - K) // stride + 1
    Wo = (W + 2 * padding - K) // stride + 1

    x_pad = jnp.pad(x, ((0, 0), (0, 0), (padding, padding), (padding, padding)))
    Hp, Wp = H + 2 * padding, W + 2 * padding

    # Flat f32 parameters for 1-D SMEM placement / scalar reads.
    wdw = dw_weight.reshape(Cin * K * K).astype(jnp.float32)   # ci*K*K + kh*K + kw
    bdw = dw_bias.astype(jnp.float32)
    wpw = pw_weight.reshape(Cout * Cin).astype(jnp.float32)    # co*Cin + ci
    bpw = pw_bias.astype(jnp.float32)

    xb = x_pad.dtype.itemsize
    ob = x.dtype.itemsize
    slack = 1 << 20
    cap = _vmem_capacity_bytes()
    budget = cap // 2                       # headroom: f32 accumulators, spill
    vmem_limit = min(int(cap * 0.85), 128 * 1024 * 1024)

    smem_specs = [pl.BlockSpec(memory_space=pltpu.MemorySpace.SMEM)] * 4
    common_params = dict(
        out_shape=jax.ShapeDtypeStruct((N, Cout, Ho * Wo), x.dtype))

    resident_bytes = 2 * Cin * Hp * Wp * xb + 2 * Cout * Ho * Wo * ob + slack

    if resident_bytes <= budget:
        # Whole padded image per grid step; BlockSpec pipelining prefetches
        # image n+1's input and writes back image n-1's output during compute.
        kernel = functools.partial(
            _sepconv_kernel_resident, cin=Cin, cout=Cout, k=K, stride=stride,
            ho=Ho, wo=Wo)
        out_flat = pl.pallas_call(
            kernel,
            grid_spec=pltpu.PrefetchScalarGridSpec(
                num_scalar_prefetch=0,
                grid=(N,),
                in_specs=[pl.BlockSpec((1, Cin, Hp, Wp),
                                       lambda n: (n, 0, 0, 0))] + smem_specs,
                out_specs=pl.BlockSpec((1, Cout, Ho * Wo), lambda n: (n, 0, 0)),
            ),
            compiler_params=pltpu.CompilerParams(
                dimension_semantics=("parallel",),
                vmem_limit_bytes=vmem_limit,
            ),
            **common_params,
        )(x_pad, wdw, bdw, wpw, bpw)
    else:
        # Row-tiled fallback: pick the LARGEST lane-dense divisor of Ho that
        # fits the per-generation VMEM budget.
        def bytes_needed(t):
            rows_t = (t - 1) * stride + K
            return 2 * Cin * rows_t * Wp * xb + 2 * Cout * t * Wo * ob + slack

        tile_h = None
        for t in range(Ho, 0, -1):
            if Ho % t == 0 and (t * Wo) % 128 == 0 and bytes_needed(t) <= budget:
                tile_h = t
                break
        if tile_h is None:
            # Full-extent block is always layout-legal even if not lane-dense.
            # TODO(synk): 4-D output row tiling for huge images whose Wo admits
            # no 128-multiple row grouping.
            tile_h = Ho
        n_h = Ho // tile_h
        rows = (tile_h - 1) * stride + K

        kernel = functools.partial(
            _sepconv_kernel_rowtiled, cin=Cin, cout=Cout, k=K, stride=stride,
            tile_h=tile_h, wo=Wo, n_h_tiles=n_h)
        out_flat = pl.pallas_call(
            kernel,
            grid_spec=pltpu.PrefetchScalarGridSpec(
                num_scalar_prefetch=0,
                grid=(N, n_h),
                in_specs=[pl.BlockSpec(memory_space=pl.ANY)] + smem_specs,
                out_specs=pl.BlockSpec((1, Cout, tile_h * Wo),
                                       lambda n, h: (n, 0, h)),
                scratch_shapes=[
                    pltpu.VMEM((2, Cin, rows, Wp), x_pad.dtype),
                    pltpu.SemaphoreType.DMA((2,)),
                ],
            ),
            compiler_params=pltpu.CompilerParams(
                dimension_semantics=("parallel", "arbitrary"),
                vmem_limit_bytes=vmem_limit,
            ),
            **common_params,
        )(x_pad, wdw, bdw, wpw, bpw)

    # Layout-compatible reshape back to NCHW.
    return out_flat.reshape(N, Cout, Ho, Wo)


def _reference(x_nchw, dw_weight, dw_bias, pw_weight, pw_bias, *, stride, padding):
    Cin = x_nchw.shape[1]
    dw = lax.conv_general_dilated(
        x_nchw, dw_weight, window_strides=(stride, stride),
        padding=[(padding, padding), (padding, padding)],
        dimension_numbers=("NCHW", "OIHW", "NCHW"),
        feature_group_count=Cin)
    dw = dw + dw_bias[None, :, None, None]
    pw = lax.conv_general_dilated(
        dw, pw_weight, window_strides=(1, 1), padding=[(0, 0), (0, 0)],
        dimension_numbers=("NCHW", "OIHW", "NCHW"))
    return pw + pw_bias[None, :, None, None]


if __name__ == "__main__":
    # Small shapes consistent with the module.
    N, Cin, H, W = 2, 4, 16, 16
    Cout, K, stride, padding = 8, 3, 1, 1

    key = jax.random.PRNGKey(0)
    k1, k2, k3, k4, k5 = jax.random.split(key, 5)

    x = jax.random.normal(k1, (N, Cin, H, W), jnp.float32)
    # Deterministic synthetic parameters (PyTorch weight shape conventions).
    dw_weight = jax.random.normal(k2, (Cin, 1, K, K), jnp.float32) * 0.1
    dw_bias = jax.random.normal(k3, (Cin,), jnp.float32) * 0.1
    pw_weight = jax.random.normal(k4, (Cout, Cin, 1, 1), jnp.float32) * 0.1
    pw_bias = jax.random.normal(k5, (Cout,), jnp.float32) * 0.1

    conv = jax.jit(functools.partial(separable_conv2d, kernel_size=K,
                                     stride=stride, padding=padding))
    out = conv(x, dw_weight, dw_bias, pw_weight, pw_bias)
    out = jax.block_until_ready(out)

    ref = _reference(x, dw_weight, dw_bias, pw_weight, pw_bias,
                     stride=stride, padding=padding)
    assert out.shape == (N, Cout, H, W), out.shape
    assert jnp.allclose(out, ref, atol=1e-4, rtol=1e-4), (
        float(jnp.max(jnp.abs(out - ref))))

    print("KERNEL_OK")
</pallas_src>

<mosaic_0001>
module attributes {stable_mosaic.version = 11 : i64} {
  func.func @_sepconv_kernel_resident(%arg0: i32, %arg1: memref<1x4x18x18xf32, #tpu.memory_space<vmem>>, %arg2: memref<36xf32, #tpu.memory_space<smem>>, %arg3: memref<4xf32, #tpu.memory_space<smem>>, %arg4: memref<32xf32, #tpu.memory_space<smem>>, %arg5: memref<8xf32, #tpu.memory_space<smem>>, %arg6: memref<1x8x256xf32, #tpu.memory_space<vmem>>) attributes {dimension_semantics = [#tpu.dimension_semantics<parallel>], iteration_bounds = array<i64: 2>, scalar_prefetch = 0 : i64, scratch_operands = 0 : i64, tpu.core_type = #tpu.core_type<tc>, window_params = [{transform_indices = @transform_0, window_bounds = array<i64: 1, 4, 18, 18>}, {transform_indices = @transform_1, window_bounds = array<i64: 36>}, {transform_indices = @transform_2, window_bounds = array<i64: 4>}, {transform_indices = @transform_3, window_bounds = array<i64: 32>}, {transform_indices = @transform_4, window_bounds = array<i64: 8>}, {transform_indices = @transform_5, window_bounds = array<i64: 1, 8, 256>}]} {
    %c0 = arith.constant 0 : index
    %c0_0 = arith.constant 0 : index
    %c0_1 = arith.constant 0 : index
    %c0_2 = arith.constant 0 : index
    %0 = vector.load %arg1[%c0, %c0_0, %c0_1, %c0_2] : memref<1x4x18x18xf32, #tpu.memory_space<vmem>>, vector<1x1x18x18xf32>
    %1 = vector.shape_cast %0 : vector<1x1x18x18xf32> to vector<18x18xf32>
    %2 = vector.extract_strided_slice %1 {offsets = [0, 0], sizes = [16, 16], strides = [1, 1]} : vector<18x18xf32> to vector<16x16xf32>
    %c0_3 = arith.constant 0 : index
    %3 = memref.load %arg2[%c0_3] : memref<36xf32, #tpu.memory_space<smem>>
    %4 = vector.broadcast %3 : f32 to vector<16x16xf32>
    %5 = arith.mulf %2, %4 : vector<16x16xf32>
    %6 = vector.extract_strided_slice %1 {offsets = [0, 1], sizes = [16, 16], strides = [1, 1]} : vector<18x18xf32> to vector<16x16xf32>
    %c1 = arith.constant 1 : index
    %7 = memref.load %arg2[%c1] : memref<36xf32, #tpu.memory_space<smem>>
    %8 = vector.broadcast %7 : f32 to vector<16x16xf32>
    %9 = arith.mulf %6, %8 : vector<16x16xf32>
    %10 = arith.addf %5, %9 : vector<16x16xf32>
    %11 = vector.extract_strided_slice %1 {offsets = [0, 2], sizes = [16, 16], strides = [1, 1]} : vector<18x18xf32> to vector<16x16xf32>
    %c2 = arith.constant 2 : index
    %12 = memref.load %arg2[%c2] : memref<36xf32, #tpu.memory_space<smem>>
    %13 = vector.broadcast %12 : f32 to vector<16x16xf32>
    %14 = arith.mulf %11, %13 : vector<16x16xf32>
    %15 = arith.addf %10, %14 : vector<16x16xf32>
    %16 = vector.extract_strided_slice %1 {offsets = [1, 0], sizes = [16, 16], strides = [1, 1]} : vector<18x18xf32> to vector<16x16xf32>
    %c3 = arith.constant 3 : index
    %17 = memref.load %arg2[%c3] : memref<36xf32, #tpu.memory_space<smem>>
    %18 = vector.broadcast %17 : f32 to vector<16x16xf32>
    %19 = arith.mulf %16, %18 : vector<16x16xf32>
    %20 = arith.addf %15, %19 : vector<16x16xf32>
    %21 = vector.extract_strided_slice %1 {offsets = [1, 1], sizes = [16, 16], strides = [1, 1]} : vector<18x18xf32> to vector<16x16xf32>
    %c4 = arith.constant 4 : index
    %22 = memref.load %arg2[%c4] : memref<36xf32, #tpu.memory_space<smem>>
    %23 = vector.broadcast %22 : f32 to vector<16x16xf32>
    %24 = arith.mulf %21, %23 : vector<16x16xf32>
    %25 = arith.addf %20, %24 : vector<16x16xf32>
    %26 = vector.extract_strided_slice %1 {offsets = [1, 2], sizes = [16, 16], strides = [1, 1]} : vector<18x18xf32> to vector<16x16xf32>
    %c5 = arith.constant 5 : index
    %27 = memref.load %arg2[%c5] : memref<36xf32, #tpu.memory_space<smem>>
    %28 = vector.broadcast %27 : f32 to vector<16x16xf32>
    %29 = arith.mulf %26, %28 : vector<16x16xf32>
    %30 = arith.addf %25, %29 : vector<16x16xf32>
    %31 = vector.extract_strided_slice %1 {offsets = [2, 0], sizes = [16, 16], strides = [1, 1]} : vector<18x18xf32> to vector<16x16xf32>
    %c6 = arith.constant 6 : index
    %32 = memref.load %arg2[%c6] : memref<36xf32, #tpu.memory_space<smem>>
    %33 = vector.broadcast %32 : f32 to vector<16x16xf32>
    %34 = arith.mulf %31, %33 : vector<16x16xf32>
    %35 = arith.addf %30, %34 : vector<16x16xf32>
    %36 = vector.extract_strided_slice %1 {offsets = [2, 1], sizes = [16, 16], strides = [1, 1]} : vector<18x18xf32> to vector<16x16xf32>
    %c7 = arith.constant 7 : index
    %37 = memref.load %arg2[%c7] : memref<36xf32, #tpu.memory_space<smem>>
    %38 = vector.broadcast %37 : f32 to vector<16x16xf32>
    %39 = arith.mulf %36, %38 : vector<16x16xf32>
    %40 = arith.addf %35, %39 : vector<16x16xf32>
    %41 = vector.extract_strided_slice %1 {offsets = [2, 2], sizes = [16, 16], strides = [1, 1]} : vector<18x18xf32> to vector<16x16xf32>
    %c8 = arith.constant 8 : index
    %42 = memref.load %arg2[%c8] : memref<36xf32, #tpu.memory_space<smem>>
    %43 = vector.broadcast %42 : f32 to vector<16x16xf32>
    %44 = arith.mulf %41, %43 : vector<16x16xf32>
    %45 = arith.addf %40, %44 : vector<16x16xf32>
    %c0_4 = arith.constant 0 : index
    %46 = memref.load %arg3[%c0_4] : memref<4xf32, #tpu.memory_space<smem>>
    %47 = vector.broadcast %46 : f32 to vector<16x16xf32>
    %48 = arith.addf %45, %47 : vector<16x16xf32>
    %c0_5 = arith.constant 0 : index
    %49 = memref.load %arg4[%c0_5] : memref<32xf32, #tpu.memory_space<smem>>
    %50 = vector.broadcast %49 : f32 to vector<16x16xf32>
    %51 = arith.mulf %48, %50 : vector<16x16xf32>
    %c4_6 = arith.constant 4 : index
    %52 = memref.load %arg4[%c4_6] : memref<32xf32, #tpu.memory_space<smem>>
    %53 = vector.broadcast %52 : f32 to vector<16x16xf32>
    %54 = arith.mulf %48, %53 : vector<16x16xf32>
    %c8_7 = arith.constant 8 : index
    %55 = memref.load %arg4[%c8_7] : memref<32xf32, #tpu.memory_space<smem>>
    %56 = vector.broadcast %55 : f32 to vector<16x16xf32>
    %57 = arith.mulf %48, %56 : vector<16x16xf32>
    %c12 = arith.constant 12 : index
    %58 = memref.load %arg4[%c12] : memref<32xf32, #tpu.memory_space<smem>>
    %59 = vector.broadcast %58 : f32 to vector<16x16xf32>
    %60 = arith.mulf %48, %59 : vector<16x16xf32>
    %c16 = arith.constant 16 : index
    %61 = memref.load %arg4[%c16] : memref<32xf32, #tpu.memory_space<smem>>
    %62 = vector.broadcast %61 : f32 to vector<16x16xf32>
    %63 = arith.mulf %48, %62 : vector<16x16xf32>
    %c20 = arith.constant 20 : index
    %64 = memref.load %arg4[%c20] : memref<32xf32, #tpu.memory_space<smem>>
    %65 = vector.broadcast %64 : f32 to vector<16x16xf32>
    %66 = arith.mulf %48, %65 : vector<16x16xf32>
    %c24 = arith.constant 24 : index
    %67 = memref.load %arg4[%c24] : memref<32xf32, #tpu.memory_space<smem>>
    %68 = vector.broadcast %67 : f32 to vector<16x16xf32>
    %69 = arith.mulf %48, %68 : vector<16x16xf32>
    %c28 = arith.constant 28 : index
    %70 = memref.load %arg4[%c28] : memref<32xf32, #tpu.memory_space<smem>>
    %71 = vector.broadcast %70 : f32 to vector<16x16xf32>
    %72 = arith.mulf %48, %71 : vector<16x16xf32>
    %c0_8 = arith.constant 0 : index
    %c1_9 = arith.constant 1 : index
    %c0_10 = arith.constant 0 : index
    %c0_11 = arith.constant 0 : index
    %73 = vector.load %arg1[%c0_8, %c1_9, %c0_10, %c0_11] : memref<1x4x18x18xf32, #tpu.memory_space<vmem>>, vector<1x1x18x18xf32>
    %74 = vector.shape_cast %73 : vector<1x1x18x18xf32> to vector<18x18xf32>
    %75 = vector.extract_strided_slice %74 {offsets = [0, 0], sizes = [16, 16], strides = [1, 1]} : vector<18x18xf32> to vector<16x16xf32>
    %c9 = arith.constant 9 : index
    %76 = memref.load %arg2[%c9] : memref<36xf32, #tpu.memory_space<smem>>
    %77 = vector.broadcast %76 : f32 to vector<16x16xf32>
    %78 = arith.mulf %75, %77 : vector<16x16xf32>
    %79 = vector.extract_strided_slice %74 {offsets = [0, 1], sizes = [16, 16], strides = [1, 1]} : vector<18x18xf32> to vector<16x16xf32>
    %c10 = arith.constant 10 : index
    %80 = memref.load %arg2[%c10] : memref<36xf32, #tpu.memory_space<smem>>
    %81 = vector.broadcast %80 : f32 to vector<16x16xf32>
    %82 = arith.mulf %79, %81 : vector<16x16xf32>
    %83 = arith.addf %78, %82 : vector<16x16xf32>
    %84 = vector.extract_strided_slice %74 {offsets = [0, 2], sizes = [16, 16], strides = [1, 1]} : vector<18x18xf32> to vector<16x16xf32>
    %c11 = arith.constant 11 : index
    %85 = memref.load %arg2[%c11] : memref<36xf32, #tpu.memory_space<smem>>
    %86 = vector.broadcast %85 : f32 to vector<16x16xf32>
    %87 = arith.mulf %84, %86 : vector<16x16xf32>
    %88 = arith.addf %83, %87 : vector<16x16xf32>
    %89 = vector.extract_strided_slice %74 {offsets = [1, 0], sizes = [16, 16], strides = [1, 1]} : vector<18x18xf32> to vector<16x16xf32>
    %c12_12 = arith.constant 12 : index
    %90 = memref.load %arg2[%c12_12] : memref<36xf32, #tpu.memory_space<smem>>
    %91 = vector.broadcast %90 : f32 to vector<16x16xf32>
    %92 = arith.mulf %89, %91 : vector<16x16xf32>
    %93 = arith.addf %88, %92 : vector<16x16xf32>
    %94 = vector.extract_strided_slice %74 {offsets = [1, 1], sizes = [16, 16], strides = [1, 1]} : vector<18x18xf32> to vector<16x16xf32>
    %c13 = arith.constant 13 : index
    %95 = memref.load %arg2[%c13] : memref<36xf32, #tpu.memory_space<smem>>
    %96 = vector.broadcast %95 : f32 to vector<16x16xf32>
    %97 = arith.mulf %94, %96 : vector<16x16xf32>
    %98 = arith.addf %93, %97 : vector<16x16xf32>
    %99 = vector.extract_strided_slice %74 {offsets = [1, 2], sizes = [16, 16], strides = [1, 1]} : vector<18x18xf32> to vector<16x16xf32>
    %c14 = arith.constant 14 : index
    %100 = memref.load %arg2[%c14] : memref<36xf32, #tpu.memory_space<smem>>
    %101 = vector.broadcast %100 : f32 to vector<16x16xf32>
    %102 = arith.mulf %99, %101 : vector<16x16xf32>
    %103 = arith.addf %98, %102 : vector<16x16xf32>
    %104 = vector.extract_strided_slice %74 {offsets = [2, 0], sizes = [16, 16], strides = [1, 1]} : vector<18x18xf32> to vector<16x16xf32>
    %c15 = arith.constant 15 : index
    %105 = memref.load %arg2[%c15] : memref<36xf32, #tpu.memory_space<smem>>
    %106 = vector.broadcast %105 : f32 to vector<16x16xf32>
    %107 = arith.mulf %104, %106 : vector<16x16xf32>
    %108 = arith.addf %103, %107 : vector<16x16xf32>
    %109 = vector.extract_strided_slice %74 {offsets = [2, 1], sizes = [16, 16], strides = [1, 1]} : vector<18x18xf32> to vector<16x16xf32>
    %c16_13 = arith.constant 16 : index
    %110 = memref.load %arg2[%c16_13] : memref<36xf32, #tpu.memory_space<smem>>
    %111 = vector.broadcast %110 : f32 to vector<16x16xf32>
    %112 = arith.mulf %109, %111 : vector<16x16xf32>
    %113 = arith.addf %108, %112 : vector<16x16xf32>
    %114 = vector.extract_strided_slice %74 {offsets = [2, 2], sizes = [16, 16], strides = [1, 1]} : vector<18x18xf32> to vector<16x16xf32>
    %c17 = arith.constant 17 : index
    %115 = memref.load %arg2[%c17] : memref<36xf32, #tpu.memory_space<smem>>
    %116 = vector.broadcast %115 : f32 to vector<16x16xf32>
    %117 = arith.mulf %114, %116 : vector<16x16xf32>
    %118 = arith.addf %113, %117 : vector<16x16xf32>
    %c1_14 = arith.constant 1 : index
    %119 = memref.load %arg3[%c1_14] : memref<4xf32, #tpu.memory_space<smem>>
    %120 = vector.broadcast %119 : f32 to vector<16x16xf32>
    %121 = arith.addf %118, %120 : vector<16x16xf32>
    %c1_15 = arith.constant 1 : index
    %122 = memref.load %arg4[%c1_15] : memref<32xf32, #tpu.memory_space<smem>>
    %123 = vector.broadcast %122 : f32 to vector<16x16xf32>
    %124 = arith.mulf %121, %123 : vector<16x16xf32>
    %125 = arith.addf %51, %124 : vector<16x16xf32>
    %c5_16 = arith.constant 5 : index
    %126 = memref.load %arg4[%c5_16] : memref<32xf32, #tpu.memory_space<smem>>
    %127 = vector.broadcast %126 : f32 to vector<16x16xf32>
    %128 = arith.mulf %121, %127 : vector<16x16xf32>
    %129 = arith.addf %54, %128 : vector<16x16xf32>
    %c9_17 = arith.constant 9 : index
    %130 = memref.load %arg4[%c9_17] : memref<32xf32, #tpu.memory_space<smem>>
    %131 = vector.broadcast %130 : f32 to vector<16x16xf32>
    %132 = arith.mulf %121, %131 : vector<16x16xf32>
    %133 = arith.addf %57, %132 : vector<16x16xf32>
    %c13_18 = arith.constant 13 : index
    %134 = memref.load %arg4[%c13_18] : memref<32xf32, #tpu.memory_space<smem>>
    %135 = vector.broadcast %134 : f32 to vector<16x16xf32>
    %136 = arith.mulf %121, %135 : vector<16x16xf32>
    %137 = arith.addf %60, %136 : vector<16x16xf32>
    %c17_19 = arith.constant 17 : index
    %138 = memref.load %arg4[%c17_19] : memref<32xf32, #tpu.memory_space<smem>>
    %139 = vector.broadcast %138 : f32 to vector<16x16xf32>
    %140 = arith.mulf %121, %139 : vector<16x16xf32>
    %141 = arith.addf %63, %140 : vector<16x16xf32>
    %c21 = arith.constant 21 : index
    %142 = memref.load %arg4[%c21] : memref<32xf32, #tpu.memory_space<smem>>
    %143 = vector.broadcast %142 : f32 to vector<16x16xf32>
    %144 = arith.mulf %121, %143 : vector<16x16xf32>
    %145 = arith.addf %66, %144 : vector<16x16xf32>
    %c25 = arith.constant 25 : index
    %146 = memref.load %arg4[%c25] : memref<32xf32, #tpu.memory_space<smem>>
    %147 = vector.broadcast %146 : f32 to vector<16x16xf32>
    %148 = arith.mulf %121, %147 : vector<16x16xf32>
    %149 = arith.addf %69, %148 : vector<16x16xf32>
    %c29 = arith.constant 29 : index
    %150 = memref.load %arg4[%c29] : memref<32xf32, #tpu.memory_space<smem>>
    %151 = vector.broadcast %150 : f32 to vector<16x16xf32>
    %152 = arith.mulf %121, %151 : vector<16x16xf32>
    %153 = arith.addf %72, %152 : vector<16x16xf32>
    %c0_20 = arith.constant 0 : index
    %c2_21 = arith.constant 2 : index
    %c0_22 = arith.constant 0 : index
    %c0_23 = arith.constant 0 : index
    %154 = vector.load %arg1[%c0_20, %c2_21, %c0_22, %c0_23] : memref<1x4x18x18xf32, #tpu.memory_space<vmem>>, vector<1x1x18x18xf32>
    %155 = vector.shape_cast %154 : vector<1x1x18x18xf32> to vector<18x18xf32>
    %156 = vector.extract_strided_slice %155 {offsets = [0, 0], sizes = [16, 16], strides = [1, 1]} : vector<18x18xf32> to vector<16x16xf32>
    %c18 = arith.constant 18 : index
    %157 = memref.load %arg2[%c18] : memref<36xf32, #tpu.memory_space<smem>>
    %158 = vector.broadcast %157 : f32 to vector<16x16xf32>
    %159 = arith.mulf %156, %158 : vector<16x16xf32>
    %160 = vector.extract_strided_slice %155 {offsets = [0, 1], sizes = [16, 16], strides = [1, 1]} : vector<18x18xf32> to vector<16x16xf32>
    %c19 = arith.constant 19 : index
    %161 = memref.load %arg2[%c19] : memref<36xf32, #tpu.memory_space<smem>>
    %162 = vector.broadcast %161 : f32 to vector<16x16xf32>
    %163 = arith.mulf %160, %162 : vector<16x16xf32>
    %164 = arith.addf %159, %163 : vector<16x16xf32>
    %165 = vector.extract_strided_slice %155 {offsets = [0, 2], sizes = [16, 16], strides = [1, 1]} : vector<18x18xf32> to vector<16x16xf32>
    %c20_24 = arith.constant 20 : index
    %166 = memref.load %arg2[%c20_24] : memref<36xf32, #tpu.memory_space<smem>>
    %167 = vector.broadcast %166 : f32 to vector<16x16xf32>
    %168 = arith.mulf %165, %167 : vector<16x16xf32>
    %169 = arith.addf %164, %168 : vector<16x16xf32>
    %170 = vector.extract_strided_slice %155 {offsets = [1, 0], sizes = [16, 16], strides = [1, 1]} : vector<18x18xf32> to vector<16x16xf32>
    %c21_25 = arith.constant 21 : index
    %171 = memref.load %arg2[%c21_25] : memref<36xf32, #tpu.memory_space<smem>>
    %172 = vector.broadcast %171 : f32 to vector<16x16xf32>
    %173 = arith.mulf %170, %172 : vector<16x16xf32>
    %174 = arith.addf %169, %173 : vector<16x16xf32>
    %175 = vector.extract_strided_slice %155 {offsets = [1, 1], sizes = [16, 16], strides = [1, 1]} : vector<18x18xf32> to vector<16x16xf32>
    %c22 = arith.constant 22 : index
    %176 = memref.load %arg2[%c22] : memref<36xf32, #tpu.memory_space<smem>>
    %177 = vector.broadcast %176 : f32 to vector<16x16xf32>
    %178 = arith.mulf %175, %177 : vector<16x16xf32>
    %179 = arith.addf %174, %178 : vector<16x16xf32>
    %180 = vector.extract_strided_slice %155 {offsets = [1, 2], sizes = [16, 16], strides = [1, 1]} : vector<18x18xf32> to vector<16x16xf32>
    %c23 = arith.constant 23 : index
    %181 = memref.load %arg2[%c23] : memref<36xf32, #tpu.memory_space<smem>>
    %182 = vector.broadcast %181 : f32 to vector<16x16xf32>
    %183 = arith.mulf %180, %182 : vector<16x16xf32>
    %184 = arith.addf %179, %183 : vector<16x16xf32>
    %185 = vector.extract_strided_slice %155 {offsets = [2, 0], sizes = [16, 16], strides = [1, 1]} : vector<18x18xf32> to vector<16x16xf32>
    %c24_26 = arith.constant 24 : index
    %186 = memref.load %arg2[%c24_26] : memref<36xf32, #tpu.memory_space<smem>>
    %187 = vector.broadcast %186 : f32 to vector<16x16xf32>
    %188 = arith.mulf %185, %187 : vector<16x16xf32>
    %189 = arith.addf %184, %188 : vector<16x16xf32>
    %190 = vector.extract_strided_slice %155 {offsets = [2, 1], sizes = [16, 16], strides = [1, 1]} : vector<18x18xf32> to vector<16x16xf32>
    %c25_27 = arith.constant 25 : index
    %191 = memref.load %arg2[%c25_27] : memref<36xf32, #tpu.memory_space<smem>>
    %192 = vector.broadcast %191 : f32 to vector<16x16xf32>
    %193 = arith.mulf %190, %192 : vector<16x16xf32>
    %194 = arith.addf %189, %193 : vector<16x16xf32>
    %195 = vector.extract_strided_slice %155 {offsets = [2, 2], sizes = [16, 16], strides = [1, 1]} : vector<18x18xf32> to vector<16x16xf32>
    %c26 = arith.constant 26 : index
    %196 = memref.load %arg2[%c26] : memref<36xf32, #tpu.memory_space<smem>>
    %197 = vector.broadcast %196 : f32 to vector<16x16xf32>
    %198 = arith.mulf %195, %197 : vector<16x16xf32>
    %199 = arith.addf %194, %198 : vector<16x16xf32>
    %c2_28 = arith.constant 2 : index
    %200 = memref.load %arg3[%c2_28] : memref<4xf32, #tpu.memory_space<smem>>
    %201 = vector.broadcast %200 : f32 to vector<16x16xf32>
    %202 = arith.addf %199, %201 : vector<16x16xf32>
    %c2_29 = arith.constant 2 : index
    %203 = memref.load %arg4[%c2_29] : memref<32xf32, #tpu.memory_space<smem>>
    %204 = vector.broadcast %203 : f32 to vector<16x16xf32>
    %205 = arith.mulf %202, %204 : vector<16x16xf32>
    %206 = arith.addf %125, %205 : vector<16x16xf32>
    %c6_30 = arith.constant 6 : index
    %207 = memref.load %arg4[%c6_30] : memref<32xf32, #tpu.memory_space<smem>>
    %208 = vector.broadcast %207 : f32 to vector<16x16xf32>
    %209 = arith.mulf %202, %208 : vector<16x16xf32>
    %210 = arith.addf %129, %209 : vector<16x16xf32>
    %c10_31 = arith.constant 10 : index
    %211 = memref.load %arg4[%c10_31] : memref<32xf32, #tpu.memory_space<smem>>
    %212 = vector.broadcast %211 : f32 to vector<16x16xf32>
    %213 = arith.mulf %202, %212 : vector<16x16xf32>
    %214 = arith.addf %133, %213 : vector<16x16xf32>
    %c14_32 = arith.constant 14 : index
    %215 = memref.load %arg4[%c14_32] : memref<32xf32, #tpu.memory_space<smem>>
    %216 = vector.broadcast %215 : f32 to vector<16x16xf32>
    %217 = arith.mulf %202, %216 : vector<16x16xf32>
    %218 = arith.addf %137, %217 : vector<16x16xf32>
    %c18_33 = arith.constant 18 : index
    %219 = memref.load %arg4[%c18_33] : memref<32xf32, #tpu.memory_space<smem>>
    %220 = vector.broadcast %219 : f32 to vector<16x16xf32>
    %221 = arith.mulf %202, %220 : vector<16x16xf32>
    %222 = arith.addf %141, %221 : vector<16x16xf32>
    %c22_34 = arith.constant 22 : index
    %223 = memref.load %arg4[%c22_34] : memref<32xf32, #tpu.memory_space<smem>>
    %224 = vector.broadcast %223 : f32 to vector<16x16xf32>
    %225 = arith.mulf %202, %224 : vector<16x16xf32>
    %226 = arith.addf %145, %225 : vector<16x16xf32>
    %c26_35 = arith.constant 26 : index
    %227 = memref.load %arg4[%c26_35] : memref<32xf32, #tpu.memory_space<smem>>
    %228 = vector.broadcast %227 : f32 to vector<16x16xf32>
    %229 = arith.mulf %202, %228 : vector<16x16xf32>
    %230 = arith.addf %149, %229 : vector<16x16xf32>
    %c30 = arith.constant 30 : index
    %231 = memref.load %arg4[%c30] : memref<32xf32, #tpu.memory_space<smem>>
    %232 = vector.broadcast %231 : f32 to vector<16x16xf32>
    %233 = arith.mulf %202, %232 : vector<16x16xf32>
    %234 = arith.addf %153, %233 : vector<16x16xf32>
    %c0_36 = arith.constant 0 : index
    %c3_37 = arith.constant 3 : index
    %c0_38 = arith.constant 0 : index
    %c0_39 = arith.constant 0 : index
    %235 = vector.load %arg1[%c0_36, %c3_37, %c0_38, %c0_39] : memref<1x4x18x18xf32, #tpu.memory_space<vmem>>, vector<1x1x18x18xf32>
    %236 = vector.shape_cast %235 : vector<1x1x18x18xf32> to vector<18x18xf32>
    %237 = vector.extract_strided_slice %236 {offsets = [0, 0], sizes = [16, 16], strides = [1, 1]} : vector<18x18xf32> to vector<16x16xf32>
    %c27 = arith.constant 27 : index
    %238 = memref.load %arg2[%c27] : memref<36xf32, #tpu.memory_space<smem>>
    %239 = vector.broadcast %238 : f32 to vector<16x16xf32>
    %240 = arith.mulf %237, %239 : vector<16x16xf32>
    %241 = vector.extract_strided_slice %236 {offsets = [0, 1], sizes = [16, 16], strides = [1, 1]} : vector<18x18xf32> to vector<16x16xf32>
    %c28_40 = arith.constant 28 : index
    %242 = memref.load %arg2[%c28_40] : memref<36xf32, #tpu.memory_space<smem>>
    %243 = vector.broadcast %242 : f32 to vector<16x16xf32>
    %244 = arith.mulf %241, %243 : vector<16x16xf32>
    %245 = arith.addf %240, %244 : vector<16x16xf32>
    %246 = vector.extract_strided_slice %236 {offsets = [0, 2], sizes = [16, 16], strides = [1, 1]} : vector<18x18xf32> to vector<16x16xf32>
    %c29_41 = arith.constant 29 : index
    %247 = memref.load %arg2[%c29_41] : memref<36xf32, #tpu.memory_space<smem>>
    %248 = vector.broadcast %247 : f32 to vector<16x16xf32>
    %249 = arith.mulf %246, %248 : vector<16x16xf32>
    %250 = arith.addf %245, %249 : vector<16x16xf32>
    %251 = vector.extract_strided_slice %236 {offsets = [1, 0], sizes = [16, 16], strides = [1, 1]} : vector<18x18xf32> to vector<16x16xf32>
    %c30_42 = arith.constant 30 : index
    %252 = memref.load %arg2[%c30_42] : memref<36xf32, #tpu.memory_space<smem>>
    %253 = vector.broadcast %252 : f32 to vector<16x16xf32>
    %254 = arith.mulf %251, %253 : vector<16x16xf32>
    %255 = arith.addf %250, %254 : vector<16x16xf32>
    %256 = vector.extract_strided_slice %236 {offsets = [1, 1], sizes = [16, 16], strides = [1, 1]} : vector<18x18xf32> to vector<16x16xf32>
    %c31 = arith.constant 31 : index
    %257 = memref.load %arg2[%c31] : memref<36xf32, #tpu.memory_space<smem>>
    %258 = vector.broadcast %257 : f32 to vector<16x16xf32>
    %259 = arith.mulf %256, %258 : vector<16x16xf32>
    %260 = arith.addf %255, %259 : vector<16x16xf32>
    %261 = vector.extract_strided_slice %236 {offsets = [1, 2], sizes = [16, 16], strides = [1, 1]} : vector<18x18xf32> to vector<16x16xf32>
    %c32 = arith.constant 32 : index
    %262 = memref.load %arg2[%c32] : memref<36xf32, #tpu.memory_space<smem>>
    %263 = vector.broadcast %262 : f32 to vector<16x16xf32>
    %264 = arith.mulf %261, %263 : vector<16x16xf32>
    %265 = arith.addf %260, %264 : vector<16x16xf32>
    %266 = vector.extract_strided_slice %236 {offsets = [2, 0], sizes = [16, 16], strides = [1, 1]} : vector<18x18xf32> to vector<16x16xf32>
    %c33 = arith.constant 33 : index
    %267 = memref.load %arg2[%c33] : memref<36xf32, #tpu.memory_space<smem>>
    %268 = vector.broadcast %267 : f32 to vector<16x16xf32>
    %269 = arith.mulf %266, %268 : vector<16x16xf32>
    %270 = arith.addf %265, %269 : vector<16x16xf32>
    %271 = vector.extract_strided_slice %236 {offsets = [2, 1], sizes = [16, 16], strides = [1, 1]} : vector<18x18xf32> to vector<16x16xf32>
    %c34 = arith.constant 34 : index
    %272 = memref.load %arg2[%c34] : memref<36xf32, #tpu.memory_space<smem>>
    %273 = vector.broadcast %272 : f32 to vector<16x16xf32>
    %274 = arith.mulf %271, %273 : vector<16x16xf32>
    %275 = arith.addf %270, %274 : vector<16x16xf32>
    %276 = vector.extract_strided_slice %236 {offsets = [2, 2], sizes = [16, 16], strides = [1, 1]} : vector<18x18xf32> to vector<16x16xf32>
    %c35 = arith.constant 35 : index
    %277 = memref.load %arg2[%c35] : memref<36xf32, #tpu.memory_space<smem>>
    %278 = vector.broadcast %277 : f32 to vector<16x16xf32>
    %279 = arith.mulf %276, %278 : vector<16x16xf32>
    %280 = arith.addf %275, %279 : vector<16x16xf32>
    %c3_43 = arith.constant 3 : index
    %281 = memref.load %arg3[%c3_43] : memref<4xf32, #tpu.memory_space<smem>>
    %282 = vector.broadcast %281 : f32 to vector<16x16xf32>
    %283 = arith.addf %280, %282 : vector<16x16xf32>
    %c3_44 = arith.constant 3 : index
    %284 = memref.load %arg4[%c3_44] : memref<32xf32, #tpu.memory_space<smem>>
    %285 = vector.broadcast %284 : f32 to vector<16x16xf32>
    %286 = arith.mulf %283, %285 : vector<16x16xf32>
    %287 = arith.addf %206, %286 : vector<16x16xf32>
    %c7_45 = arith.constant 7 : index
    %288 = memref.load %arg4[%c7_45] : memref<32xf32, #tpu.memory_space<smem>>
    %289 = vector.broadcast %288 : f32 to vector<16x16xf32>
    %290 = arith.mulf %283, %289 : vector<16x16xf32>
    %291 = arith.addf %210, %290 : vector<16x16xf32>
    %c11_46 = arith.constant 11 : index
    %292 = memref.load %arg4[%c11_46] : memref<32xf32, #tpu.memory_space<smem>>
    %293 = vector.broadcast %292 : f32 to vector<16x16xf32>
    %294 = arith.mulf %283, %293 : vector<16x16xf32>
    %295 = arith.addf %214, %294 : vector<16x16xf32>
    %c15_47 = arith.constant 15 : index
    %296 = memref.load %arg4[%c15_47] : memref<32xf32, #tpu.memory_space<smem>>
    %297 = vector.broadcast %296 : f32 to vector<16x16xf32>
    %298 = arith.mulf %283, %297 : vector<16x16xf32>
    %299 = arith.addf %218, %298 : vector<16x16xf32>
    %c19_48 = arith.constant 19 : index
    %300 = memref.load %arg4[%c19_48] : memref<32xf32, #tpu.memory_space<smem>>
    %301 = vector.broadcast %300 : f32 to vector<16x16xf32>
    %302 = arith.mulf %283, %301 : vector<16x16xf32>
    %303 = arith.addf %222, %302 : vector<16x16xf32>
    %c23_49 = arith.constant 23 : index
    %304 = memref.load %arg4[%c23_49] : memref<32xf32, #tpu.memory_space<smem>>
    %305 = vector.broadcast %304 : f32 to vector<16x16xf32>
    %306 = arith.mulf %283, %305 : vector<16x16xf32>
    %307 = arith.addf %226, %306 : vector<16x16xf32>
    %c27_50 = arith.constant 27 : index
    %308 = memref.load %arg4[%c27_50] : memref<32xf32, #tpu.memory_space<smem>>
    %309 = vector.broadcast %308 : f32 to vector<16x16xf32>
    %310 = arith.mulf %283, %309 : vector<16x16xf32>
    %311 = arith.addf %230, %310 : vector<16x16xf32>
    %c31_51 = arith.constant 31 : index
    %312 = memref.load %arg4[%c31_51] : memref<32xf32, #tpu.memory_space<smem>>
    %313 = vector.broadcast %312 : f32 to vector<16x16xf32>
    %314 = arith.mulf %283, %313 : vector<16x16xf32>
    %315 = arith.addf %234, %314 : vector<16x16xf32>
    %c0_52 = arith.constant 0 : index
    %316 = memref.load %arg5[%c0_52] : memref<8xf32, #tpu.memory_space<smem>>
    %317 = vector.broadcast %316 : f32 to vector<16x16xf32>
    %318 = arith.addf %287, %317 : vector<16x16xf32>
    %c1_53 = arith.constant 1 : index
    %319 = memref.load %arg5[%c1_53] : memref<8xf32, #tpu.memory_space<smem>>
    %320 = vector.broadcast %319 : f32 to vector<16x16xf32>
    %321 = arith.addf %291, %320 : vector<16x16xf32>
    %c2_54 = arith.constant 2 : index
    %322 = memref.load %arg5[%c2_54] : memref<8xf32, #tpu.memory_space<smem>>
    %323 = vector.broadcast %322 : f32 to vector<16x16xf32>
    %324 = arith.addf %295, %323 : vector<16x16xf32>
    %c3_55 = arith.constant 3 : index
    %325 = memref.load %arg5[%c3_55] : memref<8xf32, #tpu.memory_space<smem>>
    %326 = vector.broadcast %325 : f32 to vector<16x16xf32>
    %327 = arith.addf %299, %326 : vector<16x16xf32>
    %c4_56 = arith.constant 4 : index
    %328 = memref.load %arg5[%c4_56] : memref<8xf32, #tpu.memory_space<smem>>
    %329 = vector.broadcast %328 : f32 to vector<16x16xf32>
    %330 = arith.addf %303, %329 : vector<16x16xf32>
    %c5_57 = arith.constant 5 : index
    %331 = memref.load %arg5[%c5_57] : memref<8xf32, #tpu.memory_space<smem>>
    %332 = vector.broadcast %331 : f32 to vector<16x16xf32>
    %333 = arith.addf %307, %332 : vector<16x16xf32>
    %c6_58 = arith.constant 6 : index
    %334 = memref.load %arg5[%c6_58] : memref<8xf32, #tpu.memory_space<smem>>
    %335 = vector.broadcast %334 : f32 to vector<16x16xf32>
    %336 = arith.addf %311, %335 : vector<16x16xf32>
    %c7_59 = arith.constant 7 : index
    %337 = memref.load %arg5[%c7_59] : memref<8xf32, #tpu.memory_space<smem>>
    %338 = vector.broadcast %337 : f32 to vector<16x16xf32>
    %339 = arith.addf %315, %338 : vector<16x16xf32>
    %340 = vector.shape_cast %318 : vector<16x16xf32> to vector<1x16x16xf32>
    %341 = vector.shape_cast %321 : vector<16x16xf32> to vector<1x16x16xf32>
    %342 = vector.shape_cast %324 : vector<16x16xf32> to vector<1x16x16xf32>
    %343 = vector.shape_cast %327 : vector<16x16xf32> to vector<1x16x16xf32>
    %344 = vector.shape_cast %330 : vector<16x16xf32> to vector<1x16x16xf32>
    %345 = vector.shape_cast %333 : vector<16x16xf32> to vector<1x16x16xf32>
    %346 = vector.shape_cast %336 : vector<16x16xf32> to vector<1x16x16xf32>
    %347 = vector.shape_cast %339 : vector<16x16xf32> to vector<1x16x16xf32>
    %348 = tpu.concatenate %340, %341, %342, %343, %344, %345, %346, %347 in 0 : vector<1x16x16xf32>, vector<1x16x16xf32>, vector<1x16x16xf32>, vector<1x16x16xf32>, vector<1x16x16xf32>, vector<1x16x16xf32>, vector<1x16x16xf32>, vector<1x16x16xf32> -> vector<8x16x16xf32>
    %349 = vector.extract_strided_slice %348 {offsets = [0, 0, 0], sizes = [8, 1, 16], strides = [1, 1, 1]} : vector<8x16x16xf32> to vector<8x1x16xf32>
    %350 = vector.shape_cast %349 : vector<8x1x16xf32> to vector<8x16xf32>
    %c0_60 = arith.constant 0 : index
    %c0_61 = arith.constant 0 : index
    %c0_62 = arith.constant 0 : index
    %351 = vector.load %arg6[%c0_60, %c0_61, %c0_62] : memref<1x8x256xf32, #tpu.memory_space<vmem>>, vector<1x8x16xf32>
    %352 = vector.shape_cast %351 : vector<1x8x16xf32> to vector<8x16xf32>
    %353 = vector.shape_cast %350 : vector<8x16xf32> to vector<1x8x16xf32>
    tpu.vector_store %arg6[%c0_60, %c0_61, %c0_62], %353 {strides = array<i32>} : memref<1x8x256xf32, #tpu.memory_space<vmem>>, vector<1x8x16xf32>,
    %354 = vector.extract_strided_slice %348 {offsets = [0, 1, 0], sizes = [8, 1, 16], strides = [1, 1, 1]} : vector<8x16x16xf32> to vector<8x1x16xf32>
    %355 = vector.shape_cast %354 : vector<8x1x16xf32> to vector<8x16xf32>
    %c0_63 = arith.constant 0 : index
    %c0_64 = arith.constant 0 : index
    %c16_65 = arith.constant 16 : index
    %356 = vector.load %arg6[%c0_63, %c0_64, %c16_65] : memref<1x8x256xf32, #tpu.memory_space<vmem>>, vector<1x8x16xf32>
    %357 = vector.shape_cast %356 : vector<1x8x16xf32> to vector<8x16xf32>
    %358 = vector.shape_cast %355 : vector<8x16xf32> to vector<1x8x16xf32>
    tpu.vector_store %arg6[%c0_63, %c0_64, %c16_65], %358 {strides = array<i32>} : memref<1x8x256xf32, #tpu.memory_space<vmem>>, vector<1x8x16xf32>,
    %359 = vector.extract_strided_slice %348 {offsets = [0, 2, 0], sizes = [8, 1, 16], strides = [1, 1, 1]} : vector<8x16x16xf32> to vector<8x1x16xf32>
    %360 = vector.shape_cast %359 : vector<8x1x16xf32> to vector<8x16xf32>
    %c0_66 = arith.constant 0 : index
    %c0_67 = arith.constant 0 : index
    %c32_68 = arith.constant 32 : index
    %361 = vector.load %arg6[%c0_66, %c0_67, %c32_68] : memref<1x8x256xf32, #tpu.memory_space<vmem>>, vector<1x8x16xf32>
    %362 = vector.shape_cast %361 : vector<1x8x16xf32> to vector<8x16xf32>
    %363 = vector.shape_cast %360 : vector<8x16xf32> to vector<1x8x16xf32>
    tpu.vector_store %arg6[%c0_66, %c0_67, %c32_68], %363 {strides = array<i32>} : memref<1x8x256xf32, #tpu.memory_space<vmem>>, vector<1x8x16xf32>,
    %364 = vector.extract_strided_slice %348 {offsets = [0, 3, 0], sizes = [8, 1, 16], strides = [1, 1, 1]} : vector<8x16x16xf32> to vector<8x1x16xf32>
    %365 = vector.shape_cast %364 : vector<8x1x16xf32> to vector<8x16xf32>
    %c0_69 = arith.constant 0 : index
    %c0_70 = arith.constant 0 : index
    %c48 = arith.constant 48 : index
    %366 = vector.load %arg6[%c0_69, %c0_70, %c48] : memref<1x8x256xf32, #tpu.memory_space<vmem>>, vector<1x8x16xf32>
    %367 = vector.shape_cast %366 : vector<1x8x16xf32> to vector<8x16xf32>
    %368 = vector.shape_cast %365 : vector<8x16xf32> to vector<1x8x16xf32>
    tpu.vector_store %arg6[%c0_69, %c0_70, %c48], %368 {strides = array<i32>} : memref<1x8x256xf32, #tpu.memory_space<vmem>>, vector<1x8x16xf32>,
    %369 = vector.extract_strided_slice %348 {offsets = [0, 4, 0], sizes = [8, 1, 16], strides = [1, 1, 1]} : vector<8x16x16xf32> to vector<8x1x16xf32>
    %370 = vector.shape_cast %369 : vector<8x1x16xf32> to vector<8x16xf32>
    %c0_71 = arith.constant 0 : index
    %c0_72 = arith.constant 0 : index
    %c64 = arith.constant 64 : index
    %371 = vector.load %arg6[%c0_71, %c0_72, %c64] : memref<1x8x256xf32, #tpu.memory_space<vmem>>, vector<1x8x16xf32>
    %372 = vector.shape_cast %371 : vector<1x8x16xf32> to vector<8x16xf32>
    %373 = vector.shape_cast %370 : vector<8x16xf32> to vector<1x8x16xf32>
    tpu.vector_store %arg6[%c0_71, %c0_72, %c64], %373 {strides = array<i32>} : memref<1x8x256xf32, #tpu.memory_space<vmem>>, vector<1x8x16xf32>,
    %374 = vector.extract_strided_slice %348 {offsets = [0, 5, 0], sizes = [8, 1, 16], strides = [1, 1, 1]} : vector<8x16x16xf32> to vector<8x1x16xf32>
    %375 = vector.shape_cast %374 : vector<8x1x16xf32> to vector<8x16xf32>
    %c0_73 = arith.constant 0 : index
    %c0_74 = arith.constant 0 : index
    %c80 = arith.constant 80 : index
    %376 = vector.load %arg6[%c0_73, %c0_74, %c80] : memref<1x8x256xf32, #tpu.memory_space<vmem>>, vector<1x8x16xf32>
    %377 = vector.shape_cast %376 : vector<1x8x16xf32> to vector<8x16xf32>
    %378 = vector.shape_cast %375 : vector<8x16xf32> to vector<1x8x16xf32>
    tpu.vector_store %arg6[%c0_73, %c0_74, %c80], %378 {strides = array<i32>} : memref<1x8x256xf32, #tpu.memory_space<vmem>>, vector<1x8x16xf32>,
    %379 = vector.extract_strided_slice %348 {offsets = [0, 6, 0], sizes = [8, 1, 16], strides = [1, 1, 1]} : vector<8x16x16xf32> to vector<8x1x16xf32>
    %380 = vector.shape_cast %379 : vector<8x1x16xf32> to vector<8x16xf32>
    %c0_75 = arith.constant 0 : index
    %c0_76 = arith.constant 0 : index
    %c96 = arith.constant 96 : index
    %381 = vector.load %arg6[%c0_75, %c0_76, %c96] : memref<1x8x256xf32, #tpu.memory_space<vmem>>, vector<1x8x16xf32>
    %382 = vector.shape_cast %381 : vector<1x8x16xf32> to vector<8x16xf32>
    %383 = vector.shape_cast %380 : vector<8x16xf32> to vector<1x8x16xf32>
    tpu.vector_store %arg6[%c0_75, %c0_76, %c96], %383 {strides = array<i32>} : memref<1x8x256xf32, #tpu.memory_space<vmem>>, vector<1x8x16xf32>,
    %384 = vector.extract_strided_slice %348 {offsets = [0, 7, 0], sizes = [8, 1, 16], strides = [1, 1, 1]} : vector<8x16x16xf32> to vector<8x1x16xf32>
    %385 = vector.shape_cast %384 : vector<8x1x16xf32> to vector<8x16xf32>
    %c0_77 = arith.constant 0 : index
    %c0_78 = arith.constant 0 : index
    %c112 = arith.constant 112 : index
    %386 = vector.load %arg6[%c0_77, %c0_78, %c112] : memref<1x8x256xf32, #tpu.memory_space<vmem>>, vector<1x8x16xf32>
    %387 = vector.shape_cast %386 : vector<1x8x16xf32> to vector<8x16xf32>
    %388 = vector.shape_cast %385 : vector<8x16xf32> to vector<1x8x16xf32>
    tpu.vector_store %arg6[%c0_77, %c0_78, %c112], %388 {strides = array<i32>} : memref<1x8x256xf32, #tpu.memory_space<vmem>>, vector<1x8x16xf32>,
    %389 = vector.extract_strided_slice %348 {offsets = [0, 8, 0], sizes = [8, 1, 16], strides = [1, 1, 1]} : vector<8x16x16xf32> to vector<8x1x16xf32>
    %390 = vector.shape_cast %389 : vector<8x1x16xf32> to vector<8x16xf32>
    %c0_79 = arith.constant 0 : index
    %c0_80 = arith.constant 0 : index
    %c128 = arith.constant 128 : index
    %391 = vector.load %arg6[%c0_79, %c0_80, %c128] : memref<1x8x256xf32, #tpu.memory_space<vmem>>, vector<1x8x16xf32>
    %392 = vector.shape_cast %391 : vector<1x8x16xf32> to vector<8x16xf32>
    %393 = vector.shape_cast %390 : vector<8x16xf32> to vector<1x8x16xf32>
    tpu.vector_store %arg6[%c0_79, %c0_80, %c128], %393 {strides = array<i32>} : memref<1x8x256xf32, #tpu.memory_space<vmem>>, vector<1x8x16xf32>,
    %394 = vector.extract_strided_slice %348 {offsets = [0, 9, 0], sizes = [8, 1, 16], strides = [1, 1, 1]} : vector<8x16x16xf32> to vector<8x1x16xf32>
    %395 = vector.shape_cast %394 : vector<8x1x16xf32> to vector<8x16xf32>
    %c0_81 = arith.constant 0 : index
    %c0_82 = arith.constant 0 : index
    %c144 = arith.constant 144 : index
    %396 = vector.load %arg6[%c0_81, %c0_82, %c144] : memref<1x8x256xf32, #tpu.memory_space<vmem>>, vector<1x8x16xf32>
    %397 = vector.shape_cast %396 : vector<1x8x16xf32> to vector<8x16xf32>
    %398 = vector.shape_cast %395 : vector<8x16xf32> to vector<1x8x16xf32>
    tpu.vector_store %arg6[%c0_81, %c0_82, %c144], %398 {strides = array<i32>} : memref<1x8x256xf32, #tpu.memory_space<vmem>>, vector<1x8x16xf32>,
    %399 = vector.extract_strided_slice %348 {offsets = [0, 10, 0], sizes = [8, 1, 16], strides = [1, 1, 1]} : vector<8x16x16xf32> to vector<8x1x16xf32>
    %400 = vector.shape_cast %399 : vector<8x1x16xf32> to vector<8x16xf32>
    %c0_83 = arith.constant 0 : index
    %c0_84 = arith.constant 0 : index
    %c160 = arith.constant 160 : index
    %401 = vector.load %arg6[%c0_83, %c0_84, %c160] : memref<1x8x256xf32, #tpu.memory_space<vmem>>, vector<1x8x16xf32>
    %402 = vector.shape_cast %401 : vector<1x8x16xf32> to vector<8x16xf32>
    %403 = vector.shape_cast %400 : vector<8x16xf32> to vector<1x8x16xf32>
    tpu.vector_store %arg6[%c0_83, %c0_84, %c160], %403 {strides = array<i32>} : memref<1x8x256xf32, #tpu.memory_space<vmem>>, vector<1x8x16xf32>,
    %404 = vector.extract_strided_slice %348 {offsets = [0, 11, 0], sizes = [8, 1, 16], strides = [1, 1, 1]} : vector<8x16x16xf32> to vector<8x1x16xf32>
    %405 = vector.shape_cast %404 : vector<8x1x16xf32> to vector<8x16xf32>
    %c0_85 = arith.constant 0 : index
    %c0_86 = arith.constant 0 : index
    %c176 = arith.constant 176 : index
    %406 = vector.load %arg6[%c0_85, %c0_86, %c176] : memref<1x8x256xf32, #tpu.memory_space<vmem>>, vector<1x8x16xf32>
    %407 = vector.shape_cast %406 : vector<1x8x16xf32> to vector<8x16xf32>
    %408 = vector.shape_cast %405 : vector<8x16xf32> to vector<1x8x16xf32>
    tpu.vector_store %arg6[%c0_85, %c0_86, %c176], %408 {strides = array<i32>} : memref<1x8x256xf32, #tpu.memory_space<vmem>>, vector<1x8x16xf32>,
    %409 = vector.extract_strided_slice %348 {offsets = [0, 12, 0], sizes = [8, 1, 16], strides = [1, 1, 1]} : vector<8x16x16xf32> to vector<8x1x16xf32>
    %410 = vector.shape_cast %409 : vector<8x1x16xf32> to vector<8x16xf32>
    %c0_87 = arith.constant 0 : index
    %c0_88 = arith.constant 0 : index
    %c192 = arith.constant 192 : index
    %411 = vector.load %arg6[%c0_87, %c0_88, %c192] : memref<1x8x256xf32, #tpu.memory_space<vmem>>, vector<1x8x16xf32>
    %412 = vector.shape_cast %411 : vector<1x8x16xf32> to vector<8x16xf32>
    %413 = vector.shape_cast %410 : vector<8x16xf32> to vector<1x8x16xf32>
    tpu.vector_store %arg6[%c0_87, %c0_88, %c192], %413 {strides = array<i32>} : memref<1x8x256xf32, #tpu.memory_space<vmem>>, vector<1x8x16xf32>,
    %414 = vector.extract_strided_slice %348 {offsets = [0, 13, 0], sizes = [8, 1, 16], strides = [1, 1, 1]} : vector<8x16x16xf32> to vector<8x1x16xf32>
    %415 = vector.shape_cast %414 : vector<8x1x16xf32> to vector<8x16xf32>
    %c0_89 = arith.constant 0 : index
    %c0_90 = arith.constant 0 : index
    %c208 = arith.constant 208 : index
    %416 = vector.load %arg6[%c0_89, %c0_90, %c208] : memref<1x8x256xf32, #tpu.memory_space<vmem>>, vector<1x8x16xf32>
    %417 = vector.shape_cast %416 : vector<1x8x16xf32> to vector<8x16xf32>
    %418 = vector.shape_cast %415 : vector<8x16xf32> to vector<1x8x16xf32>
    tpu.vector_store %arg6[%c0_89, %c0_90, %c208], %418 {strides = array<i32>} : memref<1x8x256xf32, #tpu.memory_space<vmem>>, vector<1x8x16xf32>,
    %419 = vector.extract_strided_slice %348 {offsets = [0, 14, 0], sizes = [8, 1, 16], strides = [1, 1, 1]} : vector<8x16x16xf32> to vector<8x1x16xf32>
    %420 = vector.shape_cast %419 : vector<8x1x16xf32> to vector<8x16xf32>
    %c0_91 = arith.constant 0 : index
    %c0_92 = arith.constant 0 : index
    %c224 = arith.constant 224 : index
    %421 = vector.load %arg6[%c0_91, %c0_92, %c224] : memref<1x8x256xf32, #tpu.memory_space<vmem>>, vector<1x8x16xf32>
    %422 = vector.shape_cast %421 : vector<1x8x16xf32> to vector<8x16xf32>
    %423 = vector.shape_cast %420 : vector<8x16xf32> to vector<1x8x16xf32>
    tpu.vector_store %arg6[%c0_91, %c0_92, %c224], %423 {strides = array<i32>} : memref<1x8x256xf32, #tpu.memory_space<vmem>>, vector<1x8x16xf32>,
    %424 = vector.extract_strided_slice %348 {offsets = [0, 15, 0], sizes = [8, 1, 16], strides = [1, 1, 1]} : vector<8x16x16xf32> to vector<8x1x16xf32>
    %425 = vector.shape_cast %424 : vector<8x1x16xf32> to vector<8x16xf32>
    %c0_93 = arith.constant 0 : index
    %c0_94 = arith.constant 0 : index
    %c240 = arith.constant 240 : index
    %426 = vector.load %arg6[%c0_93, %c0_94, %c240] : memref<1x8x256xf32, #tpu.memory_space<vmem>>, vector<1x8x16xf32>
    %427 = vector.shape_cast %426 : vector<1x8x16xf32> to vector<8x16xf32>
    %428 = vector.shape_cast %425 : vector<8x16xf32> to vector<1x8x16xf32>
    tpu.vector_store %arg6[%c0_93, %c0_94, %c240], %428 {strides = array<i32>} : memref<1x8x256xf32, #tpu.memory_space<vmem>>, vector<1x8x16xf32>,
    return
  }
  func.func @transform_0(%arg0: i32) -> (i32, i32, i32, i32) {
    %c0_i32 = arith.constant 0 : i32
    %c0_i32_0 = arith.constant 0 : i32
    %c0_i32_1 = arith.constant 0 : i32
    %c0_i32_2 = arith.constant 0 : i32
    return %arg0, %c0_i32, %c0_i32_0, %c0_i32_1 : i32, i32, i32, i32
  }
  func.func @transform_1(%arg0: i32) -> i32 {
    %c0_i32 = arith.constant 0 : i32
    %c0_i32_0 = arith.constant 0 : i32
    return %c0_i32 : i32
  }
  func.func @transform_2(%arg0: i32) -> i32 {
    %c0_i32 = arith.constant 0 : i32
    %c0_i32_0 = arith.constant 0 : i32
    return %c0_i32 : i32
  }
  func.func @transform_3(%arg0: i32) -> i32 {
    %c0_i32 = arith.constant 0 : i32
    %c0_i32_0 = arith.constant 0 : i32
    return %c0_i32 : i32
  }
  func.func @transform_4(%arg0: i32) -> i32 {
    %c0_i32 = arith.constant 0 : i32
    %c0_i32_0 = arith.constant 0 : i32
    return %c0_i32 : i32
  }
  func.func @transform_5(%arg0: i32) -> (i32, i32, i32) {
    %c0_i32 = arith.constant 0 : i32
    %c0_i32_0 = arith.constant 0 : i32
    %c0_i32_1 = arith.constant 0 : i32
    return %arg0, %c0_i32, %c0_i32_0 : i32, i32, i32
  }
}

</mosaic_0001>

<llo_original>
// kernel: separable_conv2d.1
$region0: #{separable_conv2d.1}
  #allocation0 [shape = 'u32[]', space=smem, size = 0x4, offset = 0x4, fixed_abs, tag = 'smem constant byte address 0x4 - core index']
  #allocation1 [shape = 'u32[144,128]{1,0:T(1,128)}', space=vmem, size = 0x12000, scoped, tag = 'internal scratch']
  %s0 = inlined_call_operand.vmem [shape: f32[2,4,18,18], index: 0, kind: input, shape index: {}]
  %s1 = inlined_call_operand.vmem [shape: f32[36], index: 1, kind: input, shape index: {}]
  %s2 = inlined_call_operand.vmem [shape: f32[4], index: 2, kind: input, shape index: {}]
  %s3 = inlined_call_operand.vmem [shape: f32[32], index: 3, kind: input, shape index: {}]
  %s4 = inlined_call_operand.vmem [shape: f32[8], index: 4, kind: input, shape index: {}]
  %s5 = inlined_call_operand.vmem [shape: f32[2,8,256], index: 5, kind: output, shape index: {}]
  %s6 = sld [smem:[#allocation0]]
  $region69: #{separable_conv2d.1} parent=0
    _
  %s8 = ssub.s32 1, %s6
  %s9 = scalar_select 0, %s8, %s6
  $region1: #{separable_conv2d.1} parent=0
    #allocation2 [shape = 'u8[512]{0}', space=smem, size = 0x200, scoped, tag = 'input window, operand 1, single buffered']
    #allocation3 [shape = 's32[2]{0}', space=sflag, size = 0x8, scoped, tag = 'scoped memory for separable_conv2d.1']
    #allocation4 [shape = 'u8[512]{0}', space=smem, size = 0x200, scoped, tag = 'input window, operand 2, single buffered']
    #allocation5 [shape = 's32[1]{0}', space=sflag, size = 0x4, scoped, tag = 'scoped memory for separable_conv2d.1']
    #allocation6 [shape = 'u8[512]{0}', space=smem, size = 0x200, scoped, tag = 'input window, operand 3, single buffered']
    #allocation7 [shape = 'u8[512]{0}', space=smem, size = 0x200, scoped, tag = 'input window, operand 4, single buffered']
    #allocation8 [shape = 's32[1]{0}', space=sflag, size = 0x4, scoped, tag = 'scoped memory for separable_conv2d.1']
    %10 = vsyncpa [#allocation3], 0
    %11 = vsyncpa [#allocation5], 0
    %12 = vsyncpa [#allocation8], 0
    loop: start=0, step=1, limit=4
    $region2: #{separable_conv2d.1} parent=1 // loop_pre_header
      _
    $region3: #{separable_conv2d.1} parent=1 // loop_header
      %s14 = sphi 0, %s18
      %p15 = scmp.ge.s32.totalorder %s14, 4
      %s24 = sphi 0, %s26
      %s27 = sphi 0, %s24
      %s28 = sphi 0, %s27
      %s44 = sphi 0, %s28
      %s48 = sphi 0, %s48
      %s50 = sphi 0, %s48
      %s51 = sphi 0, %s50
      %s65 = sphi 0, %s51
      %s69 = sphi 0, %s69
      %s71 = sphi 0, %s69
      %s72 = sphi 0, %s71
      %s86 = sphi 0, %s72
      %s90 = sphi 0, %s90
      %s92 = sphi 0, %s90
      %s93 = sphi 0, %s92
      %s107 = sphi 0, %s93
      %s111 = sphi 0, %s111
      %s113 = sphi 0, %s111
      %s114 = sphi 0, %s113
      %s128 = sphi 0, %s114
      %s134 = sphi 0, %s136
      %s137 = sphi 0, %s134
      %s138 = sphi 0, %s137
      %s154 = sphi 0, %s138
    $region4: #{separable_conv2d.1} parent=1 // loop_header_branch
      %17 = sbr.rel (%p15) target = $region8
    $region5: #{separable_conv2d.1} parent=1 // loop_body
      %s19 = ssub.s32 %s14, 1
      %s20 = ssub.s32 %s14, 2
      %s21 = sadd.s32 %s14, 1
      %s22 = ssub.s32 %s14, %s21
      %p23 = scmp.eq.s32.totalorder %s22, 0
      %s25 = sadd.s32 %s24, 1
      %s26 = scalar_select %p23, %s24, %s25
      %p29 = pneg %p23
      %p30 = scmp.eq.s32.totalorder %s14, 1
      %p31 = por %p29, %p30
      %p32 = scmp.ne.s32.totalorder %s24, %s27
      %p33 = scmp.eq.s32.totalorder %s14, 0
      %p34 = por %p32, %p33
      %p35 = scmp.ne.s32.totalorder %s24, %s27
      %p36 = scmp.eq.s32.totalorder %s19, 1
      %p37 = por %p35, %p36
      %p38 = scmp.ne.s32.totalorder %s27, %s28
      %p39 = scmp.eq.s32.totalorder %s19, 0
      %p40 = por %p38, %p39
      %p41 = scmp.ne.s32.totalorder %s27, %s28
      %p42 = scmp.eq.s32.totalorder %s20, 1
      %p43 = por %p41, %p42
      %p45 = scmp.ne.s32.totalorder %s28, %s44
      %p46 = scmp.eq.s32.totalorder %s20, 0
      %p47 = por %p45, %p46
      %s49 = sadd.s32 %s48, 1
      %p52 = scmp.eq.s32.totalorder %s14, 1
      %p53 = scmp.ne.s32.totalorder %s48, %s50
      %p54 = scmp.eq.s32.totalorder %s14, 0
      %p55 = por %p53, %p54
      %p56 = scmp.ne.s32.totalorder %s48, %s50
      %p57 = scmp.eq.s32.totalorder %s19, 1
      %p58 = por %p56, %p57
      %p59 = scmp.ne.s32.totalorder %s50, %s51
      %p60 = scmp.eq.s32.totalorder %s19, 0
      %p61 = por %p59, %p60
      %p62 = scmp.ne.s32.totalorder %s50, %s51
      %p63 = scmp.eq.s32.totalorder %s20, 1
      %p64 = por %p62, %p63
      %p66 = scmp.ne.s32.totalorder %s51, %s65
      %p67 = scmp.eq.s32.totalorder %s20, 0
      %p68 = por %p66, %p67
      %s70 = sadd.s32 %s69, 1
      %p73 = scmp.eq.s32.totalorder %s14, 1
      %p74 = scmp.ne.s32.totalorder %s69, %s71
      %p75 = scmp.eq.s32.totalorder %s14, 0
      %p76 = por %p74, %p75
      %p77 = scmp.ne.s32.totalorder %s69, %s71
      %p78 = scmp.eq.s32.totalorder %s19, 1
      %p79 = por %p77, %p78
      %p80 = scmp.ne.s32.totalorder %s71, %s72
      %p81 = scmp.eq.s32.totalorder %s19, 0
      %p82 = por %p80, %p81
      %p83 = scmp.ne.s32.totalorder %s71, %s72
      %p84 = scmp.eq.s32.totalorder %s20, 1
      %p85 = por %p83, %p84
      %p87 = scmp.ne.s32.totalorder %s72, %s86
      %p88 = scmp.eq.s32.totalorder %s20, 0
      %p89 = por %p87, %p88
      %s91 = sadd.s32 %s90, 1
      %p94 = scmp.eq.s32.totalorder %s14, 1
      %p95 = scmp.ne.s32.totalorder %s90, %s92
      %p96 = scmp.eq.s32.totalorder %s14, 0
      %p97 = por %p95, %p96
      %p98 = scmp.ne.s32.totalorder %s90, %s92
      %p99 = scmp.eq.s32.totalorder %s19, 1
      %p100 = por %p98, %p99
      %p101 = scmp.ne.s32.totalorder %s92, %s93
      %p102 = scmp.eq.s32.totalorder %s19, 0
      %p103 = por %p101, %p102
      %p104 = scmp.ne.s32.totalorder %s92, %s93
      %p105 = scmp.eq.s32.totalorder %s20, 1
      %p106 = por %p104, %p105
      %p108 = scmp.ne.s32.totalorder %s93, %s107
      %p109 = scmp.eq.s32.totalorder %s20, 0
      %p110 = por %p108, %p109
      %s112 = sadd.s32 %s111, 1
      %p115 = scmp.eq.s32.totalorder %s14, 1
      %p116 = scmp.ne.s32.totalorder %s111, %s113
      %p117 = scmp.eq.s32.totalorder %s14, 0
      %p118 = por %p116, %p117
      %p119 = scmp.ne.s32.totalorder %s111, %s113
      %p120 = scmp.eq.s32.totalorder %s19, 1
      %p121 = por %p119, %p120
      %p122 = scmp.ne.s32.totalorder %s113, %s114
      %p123 = scmp.eq.s32.totalorder %s19, 0
      %p124 = por %p122, %p123
      %p125 = scmp.ne.s32.totalorder %s113, %s114
      %p126 = scmp.eq.s32.totalorder %s20, 1
      %p127 = por %p125, %p126
      %p129 = scmp.ne.s32.totalorder %s114, %s128
      %p130 = scmp.eq.s32.totalorder %s20, 0
      %p131 = por %p129, %p130
      %s132 = ssub.s32 %s14, %s21
      %p133 = scmp.eq.s32.totalorder %s132, 0
      %s135 = sadd.s32 %s134, 1
      %s136 = scalar_select %p133, %s134, %s135
      %p139 = pneg %p133
      %p140 = scmp.eq.s32.totalorder %s14, 1
      %p141 = por %p139, %p140
      %p142 = scmp.ne.s32.totalorder %s134, %s137
      %p143 = scmp.eq.s32.totalorder %s14, 0
      %p144 = por %p142, %p143
      %p145 = scmp.ne.s32.totalorder %s134, %s137
      %p146 = scmp.eq.s32.totalorder %s19, 1
      %p147 = por %p145, %p146
      %p148 = scmp.ne.s32.totalorder %s137, %s138
      %p149 = scmp.eq.s32.totalorder %s19, 0
      %p150 = por %p148, %p149
      %p151 = scmp.ne.s32.totalorder %s137, %s138
      %p152 = scmp.eq.s32.totalorder %s20, 1
      %p153 = por %p151, %p152
      %p155 = scmp.ne.s32.totalorder %s138, %s154
      %p156 = scmp.eq.s32.totalorder %s20, 0
      %p157 = por %p155, %p156
      %p158 = scmp.le.s32.totalorder 1, %s14
      %p159 = scmp.lt.s32.totalorder %s14, 3
      %p160 = pnand %p158, %p159
      %p161 = pneg %p160
      // Predicated region
      $region9: #{separable_conv2d.1} parent=5 // pred_check
        _
      $region10: #{separable_conv2d.1} parent=5 // pred_check_branch
        %163 = sbr.rel (%p160) target = $region12
      $region11: #{separable_conv2d.1} parent=5 // pred_region
        %s164 = ssub.s32 %s14, 1
        // Predicated region
        $region13: #{separable_conv2d.1} parent=11 // pred_check
          %p165 = pneg %p61
        $region14: #{separable_conv2d.1} parent=11 // pred_check_branch
          %167 = sbr.rel (%p165) target = $region16
        $region15: #{separable_conv2d.1} parent=11 // pred_region
          %s169 = ssub.s32 16, 16
          %170 = vsyncadd [#allocation3], %s169
          %s172 = sshll.u32 %s1, 4
          %s173 = int_to_ptr.vmem [resolvable:$true] %s172
          %175 = dma.vmem_to_smem %s173, 16, [#allocation2], [#allocation3]
        $region16: #{separable_conv2d.1} parent=11 // pred_fallthru
          _
        // Predicated region
        $region17: #{separable_conv2d.1} parent=11 // pred_check
          %p176 = pneg %p82
        $region18: #{separable_conv2d.1} parent=11 // pred_check_branch
          %178 = sbr.rel (%p176) target = $region20
        $region19: #{separable_conv2d.1} parent=11 // pred_region
          %s180 = ssub.s32 16, 16
          %181 = vsyncadd [#allocation5], %s180
          %s183 = sshll.u32 %s2, 4
          %s184 = int_to_ptr.vmem [resolvable:$true] %s183
          %186 = dma.vmem_to_smem %s184, 16, [#allocation4], [#allocation5]
        $region20: #{separable_conv2d.1} parent=11 // pred_fallthru
          _
        // Predicated region
        $region21: #{separable_conv2d.1} parent=11 // pred_check
          %p187 = pneg %p103
        $region22: #{separable_conv2d.1} parent=11 // pred_check_branch
          %189 = sbr.rel (%p187) target = $region24
        $region23: #{separable_conv2d.1} parent=11 // pred_region
          %s191 = ssub.s32 16, 16
          %192 = vsyncadd [#allocation5], %s191
          %s194 = sshll.u32 %s3, 4
          %s195 = int_to_ptr.vmem [resolvable:$true] %s194
          %197 = dma.vmem_to_smem %s195, 16, [#allocation6], [#allocation5]
        $region24: #{separable_conv2d.1} parent=11 // pred_fallthru
          _
        // Predicated region
        $region25: #{separable_conv2d.1} parent=11 // pred_check
          %p198 = pneg %p124
        $region26: #{separable_conv2d.1} parent=11 // pred_check_branch
          %200 = sbr.rel (%p198) target = $region28
        $region27: #{separable_conv2d.1} parent=11 // pred_region
          %s202 = ssub.s32 16, 16
          %203 = vsyncadd [#allocation8], %s202
          %s205 = sshll.u32 %s4, 4
          %s206 = int_to_ptr.vmem [resolvable:$true] %s205
          %208 = dma.vmem_to_smem %s206, 16, [#allocation7], [#allocation8]
        $region28: #{separable_conv2d.1} parent=11 // pred_fallthru
          _
      $region12: #{separable_conv2d.1} parent=5 // pred_fallthru
        _
      %p209 = scmp.lt.s32.totalorder %s14, 2
      // Predicated region
      $region29: #{separable_conv2d.1} parent=5 // pred_check
        %p210 = pneg %p209
      $region30: #{separable_conv2d.1} parent=5 // pred_check_branch
        %212 = sbr.rel (%p210) target = $region32
      $region31: #{separable_conv2d.1} parent=5 // pred_region
        // Predicated region
        $region33: #{separable_conv2d.1} parent=31 // pred_check
          %p213 = pneg %p34
        $region34: #{separable_conv2d.1} parent=31 // pred_check_branch
          %215 = sbr.rel (%p213) target = $region36
        $region35: #{separable_conv2d.1} parent=31 // pred_region
          %p216 = scmp.lt.s32.totalorder %s14, 1
          %s217 = scalar_select %p216, %s14, 1
          %s218 = smul.addr %s217, 12
          %s219 = smul.addr %s218, 8
          %s220 = scalar_lea.vmem %s0, %s219
        $region36: #{separable_conv2d.1} parent=31 // pred_fallthru
          _
      $region32: #{separable_conv2d.1} parent=5 // pred_fallthru
        _
      %p221 = scmp.le.s32.totalorder 1, %s14
      %p222 = scmp.lt.s32.totalorder %s14, 3
      %p223 = pnand %p221, %p222
      %p224 = pneg %p223
      // Predicated region
      $region37: #{separable_conv2d.1} parent=5 // pred_check
        _
      $region38: #{separable_conv2d.1} parent=5 // pred_check_branch
        %226 = sbr.rel (%p223) target = $region40
      $region39: #{separable_conv2d.1} parent=5 // pred_region
        %s227 = ssub.s32 %s14, 1
        // Predicated region
        $region41: #{separable_conv2d.1} parent=39 // pred_check
          %p228 = pneg %p61
        $region42: #{separable_conv2d.1} parent=39 // pred_check_branch
          %230 = sbr.rel (%p228) target = $region44
        $region43: #{separable_conv2d.1} parent=39 // pred_region
          %231 = dma.done [#allocation3], 16
        $region44: #{separable_conv2d.1} parent=39 // pred_fallthru
          _
        // Predicated region
        $region45: #{separable_conv2d.1} parent=39 // pred_check
          %p232 = pneg %p82
        $region46: #{separable_conv2d.1} parent=39 // pred_check_branch
          %234 = sbr.rel (%p232) target = $region48
        $region47: #{separable_conv2d.1} parent=39 // pred_region
          %235 = dma.done [#allocation5], 16
        $region48: #{separable_conv2d.1} parent=39 // pred_fallthru
          _
        // Predicated region
        $region49: #{separable_conv2d.1} parent=39 // pred_check
          %p236 = pneg %p103
        $region50: #{separable_conv2d.1} parent=39 // pred_check_branch
          %238 = sbr.rel (%p236) target = $region52
        $region51: #{separable_conv2d.1} parent=39 // pred_region
          %239 = dma.done [#allocation5], 16
        $region52: #{separable_conv2d.1} parent=39 // pred_fallthru
          _
        // Predicated region
        $region53: #{separable_conv2d.1} parent=39 // pred_check
          %p240 = pneg %p124
        $region54: #{separable_conv2d.1} parent=39 // pred_check_branch
          %242 = sbr.rel (%p240) target = $region56
        $region55: #{separable_conv2d.1} parent=39 // pred_region
          %243 = dma.done [#allocation8], 16
        $region56: #{separable_conv2d.1} parent=39 // pred_fallthru
          _
        %244 = sfence
        %p245 = scmp.lt.s32.totalorder %s19, 1
        %s246 = scalar_select %p245, %s19, 1
        %s247 = smul.addr %s246, 12
        %s248 = smul.addr %s247, 8
        %s249 = scalar_lea.vmem %s0, %s248
        %p250 = pneg %p40
        %p251 = pneg %p37
        %p252 = pneg %p61
        %p253 = pneg %p58
        %p254 = pneg %p82
        %p255 = pneg %p79
        %p256 = pneg %p103
        %p257 = pneg %p100
        %p258 = pneg %p124
        %p259 = pneg %p121
        %p260 = pneg %p150
        %p261 = pneg %p147
        %p262 = scmp.lt.s32.totalorder %s19, 1
        %s263 = scalar_select %p262, %s19, 1
        %s264 = smul.addr %s263, 2
        %s265 = smul.addr %s264, 8
        %s266 = scalar_lea.vmem %s5, %s265
        %p267 = scmp.lt.s32.totalorder %s19, 1
        %s268 = scalar_select %p267, %s19, 1
        %s269 = smul.addr %s268, 12
        %s270 = smul.addr %s269, 8
        %s271 = scalar_lea.vmem %s0, %s270
        %p272 = scmp.lt.s32.totalorder %s19, 1
        %s273 = scalar_select %p272, %s19, 1
        %s274 = smul.addr %s273, 2
        %s275 = smul.addr %s274, 8
        %s276 = scalar_lea.vmem %s5, %s275
        %v277 = vld [vmem:[%s271] sm:$0xff]
        %v278 = vld [vmem:[%s271 + $0x8] sm:$0xff]
        %v279 = vld [vmem:[%s271 + $0x10] sm:$0x3]
        %s280 = sld [smem:[#allocation2]]
        %v281 = vstv %s280
        %v282 = vmul.f32 %v277, %v281
        %v283 = vmul.f32 %v278, %v281
        %s284 = sld [smem:[#allocation2 + $0x1]]
        %v285 = vstv %s284
        %v286 = vmul.f32 %v277, %v285
        %v287 = vmul.f32 %v278, %v285
        %290 = vrot.lane.b32.xlu0 %v286, 127
        %v291 = vpop.permute.xlu0 %290
        %292 = vrot.lane.b32.xlu0 %v287, 127
        %v293 = vpop.permute.xlu0 %292
        %v296 = vadd.f32 %v282, %v291
        %v297 = vadd.f32 %v283, %v293
        %s298 = sld [smem:[#allocation2 + $0x2]]
        %v299 = vstv %s298
        %v300 = vmul.f32 %v277, %v299
        %v301 = vmul.f32 %v278, %v299
        %304 = vrot.lane.b32.xlu0 %v300, 126
        %v305 = vpop.permute.xlu0 %304
        %306 = vrot.lane.b32.xlu0 %v301, 126
        %v307 = vpop.permute.xlu0 %306
        %v310 = vadd.f32 %v296, %v305
        %v311 = vadd.f32 %v297, %v307
        %s312 = sld [smem:[#allocation2 + $0x3]]
        %v313 = vstv %s312
        %v314 = vmul.f32 %v277, %v313
        %v315 = vmul.f32 %v278, %v313
        %v316 = vmul.f32 %v279, %v313
        %vm320 = vcmask 1046528
        %v321 = vrot.slane %v314, 1
        %v322 = vrot.slane %v315, 1
        %v323 = vsel %vm320, %v321, %v322
        %v324 = vrot.slane %v316, 1
        %v325 = vsel %vm320, %v322, %v324
        %v328 = vadd.f32 %v310, %v323
        %v329 = vadd.f32 %v311, %v325
        %s330 = sld [smem:[#allocation2 + $0x4]]
        %v331 = vstv %s330
        %v332 = vmul.f32 %v277, %v331
        %v333 = vmul.f32 %v278, %v331
        %v334 = vmul.f32 %v279, %v331
        %v338 = vrot.slane %v332, 1
        %v339 = vrot.slane %v333, 1
        %v340 = vsel %vm320, %v338, %v339
        %v341 = vrot.slane %v334, 1
        %v342 = vsel %vm320, %v339, %v341
        %343 = vrot.lane.b32.xlu0 %v340, 127
        %v344 = vpop.permute.xlu0 %343
        %345 = vrot.lane.b32.xlu0 %v342, 127
        %v346 = vpop.permute.xlu0 %345
        %v349 = vadd.f32 %v328, %v344
        %v350 = vadd.f32 %v329, %v346
        %s351 = sld [smem:[#allocation2 + $0x5]]
        %v352 = vstv %s351
        %v353 = vmul.f32 %v277, %v352
        %v354 = vmul.f32 %v278, %v352
        %v355 = vmul.f32 %v279, %v352
        %v359 = vrot.slane %v353, 1
        %v360 = vrot.slane %v354, 1
        %v361 = vsel %vm320, %v359, %v360
        %v362 = vrot.slane %v355, 1
        %v363 = vsel %vm320, %v360, %v362
        %364 = vrot.lane.b32.xlu0 %v361, 126
        %v365 = vpop.permute.xlu0 %364
        %366 = vrot.lane.b32.xlu0 %v363, 126
        %v367 = vpop.permute.xlu0 %366
        %v370 = vadd.f32 %v349, %v365
        %v371 = vadd.f32 %v350, %v367
        %s372 = sld [smem:[#allocation2 + $0x6]]
        %v373 = vstv %s372
        %v374 = vmul.f32 %v277, %v373
        %v375 = vmul.f32 %v278, %v373
        %v376 = vmul.f32 %v279, %v373
        %vm380 = vcmask 1045504
        %v381 = vrot.slane %v374, 2
        %v382 = vrot.slane %v375, 2
        %v383 = vsel %vm380, %v381, %v382
        %v384 = vrot.slane %v376, 2
        %v385 = vsel %vm380, %v382, %v384
        %v388 = vadd.f32 %v370, %v383
        %v389 = vadd.f32 %v371, %v385
        %s390 = sld [smem:[#allocation2 + $0x7]]
        %v391 = vstv %s390
        %v392 = vmul.f32 %v277, %v391
        %v393 = vmul.f32 %v278, %v391
        %v394 = vmul.f32 %v279, %v391
        %v398 = vrot.slane %v392, 2
        %v399 = vrot.slane %v393, 2
        %v400 = vsel %vm380, %v398, %v399
        %v401 = vrot.slane %v394, 2
        %v402 = vsel %vm380, %v399, %v401
        %403 = vrot.lane.b32.xlu0 %v400, 127
        %v404 = vpop.permute.xlu0 %403
        %405 = vrot.lane.b32.xlu0 %v402, 127
        %v406 = vpop.permute.xlu0 %405
        %v409 = vadd.f32 %v388, %v404
        %v410 = vadd.f32 %v389, %v406
        %s411 = sld [smem:[#allocation2 + $0x8]]
        %v412 = vstv %s411
        %v413 = vmul.f32 %v277, %v412
        %v414 = vmul.f32 %v278, %v412
        %v415 = vmul.f32 %v279, %v412
        %v419 = vrot.slane %v413, 2
        %v420 = vrot.slane %v414, 2
        %v421 = vsel %vm380, %v419, %v420
        %v422 = vrot.slane %v415, 2
        %v423 = vsel %vm380, %v420, %v422
        %424 = vrot.lane.b32.xlu0 %v421, 126
        %v425 = vpop.permute.xlu0 %424
        %426 = vrot.lane.b32.xlu0 %v423, 126
        %v427 = vpop.permute.xlu0 %426
        %v430 = vadd.f32 %v409, %v425
        %v431 = vadd.f32 %v410, %v427
        %s432 = sld [smem:[#allocation4]]
        %v433 = vstv %s432
        %v434 = vadd.f32 %v430, %v433
        %v435 = vadd.f32 %v431, %v433
        %s436 = sld [smem:[#allocation6]]
        %v437 = vstv %s436
        %v438 = vmul.f32 %v434, %v437
        %v439 = vmul.f32 %v435, %v437
        %s440 = sld [smem:[#allocation6 + $0x4]]
        %v441 = vstv %s440
        %v442 = vmul.f32 %v434, %v441
        %v443 = vmul.f32 %v435, %v441
        %s444 = sld [smem:[#allocation6 + $0x8]]
        %v445 = vstv %s444
        %v446 = vmul.f32 %v434, %v445
        %v447 = vmul.f32 %v435, %v445
        %s448 = sld [smem:[#allocation6 + $0xc]]
        %v449 = vstv %s448
        %v450 = vmul.f32 %v434, %v449
        %v451 = vmul.f32 %v435, %v449
        %s452 = sld [smem:[#allocation6 + $0x10]]
        %v453 = vstv %s452
        %v454 = vmul.f32 %v434, %v453
        %v455 = vmul.f32 %v435, %v453
        %s456 = sld [smem:[#allocation6 + $0x14]]
        %v457 = vstv %s456
        %v458 = vmul.f32 %v434, %v457
        %v459 = vmul.f32 %v435, %v457
        %s460 = sld [smem:[#allocation6 + $0x18]]
        %v461 = vstv %s460
        %v462 = vmul.f32 %v434, %v461
        %v463 = vmul.f32 %v435, %v461
        %s464 = sld [smem:[#allocation6 + $0x1c]]
        %v465 = vstv %s464
        %v466 = vmul.f32 %v434, %v465
        %v467 = vmul.f32 %v435, %v465
        %s468 = scalar_lea.vmem %s271, 24
        %v469 = vld [vmem:[%s468] sm:$0xff]
        %v470 = vld [vmem:[%s468 + $0x8] sm:$0xff]
        %v471 = vld [vmem:[%s468 + $0x10] sm:$0x3]
        %s472 = sld [smem:[#allocation2 + $0x9]]
        %v473 = vstv %s472
        %v474 = vmul.f32 %v469, %v473
        %v475 = vmul.f32 %v470, %v473
        %s476 = sld [smem:[#allocation2 + $0xa]]
        %v477 = vstv %s476
        %v478 = vmul.f32 %v469, %v477
        %v479 = vmul.f32 %v470, %v477
        %482 = vrot.lane.b32.xlu0 %v478, 127
        %v483 = vpop.permute.xlu0 %482
        %484 = vrot.lane.b32.xlu0 %v479, 127
        %v485 = vpop.permute.xlu0 %484
        %v488 = vadd.f32 %v474, %v483
        %v489 = vadd.f32 %v475, %v485
        %s490 = sld [smem:[#allocation2 + $0xb]]
        %v491 = vstv %s490
        %v492 = vmul.f32 %v469, %v491
        %v493 = vmul.f32 %v470, %v491
        %496 = vrot.lane.b32.xlu0 %v492, 126
        %v497 = vpop.permute.xlu0 %496
        %498 = vrot.lane.b32.xlu0 %v493, 126
        %v499 = vpop.permute.xlu0 %498
        %v502 = vadd.f32 %v488, %v497
        %v503 = vadd.f32 %v489, %v499
        %s504 = sld [smem:[#allocation2 + $0xc]]
        %v505 = vstv %s504
        %v506 = vmul.f32 %v469, %v505
        %v507 = vmul.f32 %v470, %v505
        %v508 = vmul.f32 %v471, %v505
        %v512 = vrot.slane %v506, 1
        %v513 = vrot.slane %v507, 1
        %v514 = vsel %vm320, %v512, %v513
        %v515 = vrot.slane %v508, 1
        %v516 = vsel %vm320, %v513, %v515
        %v519 = vadd.f32 %v502, %v514
        %v520 = vadd.f32 %v503, %v516
        %s521 = sld [smem:[#allocation2 + $0xd]]
        %v522 = vstv %s521
        %v523 = vmul.f32 %v469, %v522
        %v524 = vmul.f32 %v470, %v522
        %v525 = vmul.f32 %v471, %v522
        %v529 = vrot.slane %v523, 1
        %v530 = vrot.slane %v524, 1
        %v531 = vsel %vm320, %v529, %v530
        %v532 = vrot.slane %v525, 1
        %v533 = vsel %vm320, %v530, %v532
        %534 = vrot.lane.b32.xlu0 %v531, 127
        %v535 = vpop.permute.xlu0 %534
        %536 = vrot.lane.b32.xlu0 %v533, 127
        %v537 = vpop.permute.xlu0 %536
        %v540 = vadd.f32 %v519, %v535
        %v541 = vadd.f32 %v520, %v537
        %s542 = sld [smem:[#allocation2 + $0xe]]
        %v543 = vstv %s542
        %v544 = vmul.f32 %v469, %v543
        %v545 = vmul.f32 %v470, %v543
        %v546 = vmul.f32 %v471, %v543
        %v550 = vrot.slane %v544, 1
        %v551 = vrot.slane %v545, 1
        %v552 = vsel %vm320, %v550, %v551
        %v553 = vrot.slane %v546, 1
        %v554 = vsel %vm320, %v551, %v553
        %555 = vrot.lane.b32.xlu0 %v552, 126
        %v556 = vpop.permute.xlu0 %555
        %557 = vrot.lane.b32.xlu0 %v554, 126
        %v558 = vpop.permute.xlu0 %557
        %v561 = vadd.f32 %v540, %v556
        %v562 = vadd.f32 %v541, %v558
        %s563 = sld [smem:[#allocation2 + $0xf]]
        %v564 = vstv %s563
        %v565 = vmul.f32 %v469, %v564
        %v566 = vmul.f32 %v470, %v564
        %v567 = vmul.f32 %v471, %v564
        %v571 = vrot.slane %v565, 2
        %v572 = vrot.slane %v566, 2
        %v573 = vsel %vm380, %v571, %v572
        %v574 = vrot.slane %v567, 2
        %v575 = vsel %vm380, %v572, %v574
        %v578 = vadd.f32 %v561, %v573
        %v579 = vadd.f32 %v562, %v575
        %s580 = sld [smem:[#allocation2 + $0x10]]
        %v581 = vstv %s580
        %v582 = vmul.f32 %v469, %v581
        %v583 = vmul.f32 %v470, %v581
        %v584 = vmul.f32 %v471, %v581
        %v588 = vrot.slane %v582, 2
        %v589 = vrot.slane %v583, 2
        %v590 = vsel %vm380, %v588, %v589
        %v591 = vrot.slane %v584, 2
        %v592 = vsel %vm380, %v589, %v591
        %593 = vrot.lane.b32.xlu0 %v590, 127
        %v594 = vpop.permute.xlu0 %593
        %595 = vrot.lane.b32.xlu0 %v592, 127
        %v596 = vpop.permute.xlu0 %595
        %v599 = vadd.f32 %v578, %v594
        %v600 = vadd.f32 %v579, %v596
        %s601 = sld [smem:[#allocation2 + $0x11]]
        %v602 = vstv %s601
        %v603 = vmul.f32 %v469, %v602
        %v604 = vmul.f32 %v470, %v602
        %v605 = vmul.f32 %v471, %v602
        %v609 = vrot.slane %v603, 2
        %v610 = vrot.slane %v604, 2
        %v611 = vsel %vm380, %v609, %v610
        %v612 = vrot.slane %v605, 2
        %v613 = vsel %vm380, %v610, %v612
        %614 = vrot.lane.b32.xlu0 %v611, 126
        %v615 = vpop.permute.xlu0 %614
        %616 = vrot.lane.b32.xlu0 %v613, 126
        %v617 = vpop.permute.xlu0 %616
        %v620 = vadd.f32 %v599, %v615
        %v621 = vadd.f32 %v600, %v617
        %s622 = sld [smem:[#allocation4 + $0x1]]
        %v623 = vstv %s622
        %v624 = vadd.f32 %v620, %v623
        %v625 = vadd.f32 %v621, %v623
        %s626 = sld [smem:[#allocation6 + $0x1]]
        %v627 = vstv %s626
        %v628 = vmul.f32 %v624, %v627
        %v629 = vmul.f32 %v625, %v627
        %v630 = vadd.f32 %v438, %v628
        %v631 = vadd.f32 %v439, %v629
        %s632 = sld [smem:[#allocation6 + $0x5]]
        %v633 = vstv %s632
        %v634 = vmul.f32 %v624, %v633
        %v635 = vmul.f32 %v625, %v633
        %v636 = vadd.f32 %v442, %v634
        %v637 = vadd.f32 %v443, %v635
        %s638 = sld [smem:[#allocation6 + $0x9]]
        %v639 = vstv %s638
        %v640 = vmul.f32 %v624, %v639
        %v641 = vmul.f32 %v625, %v639
        %v642 = vadd.f32 %v446, %v640
        %v643 = vadd.f32 %v447, %v641
        %s644 = sld [smem:[#allocation6 + $0xd]]
        %v645 = vstv %s644
        %v646 = vmul.f32 %v624, %v645
        %v647 = vmul.f32 %v625, %v645
        %v648 = vadd.f32 %v450, %v646
        %v649 = vadd.f32 %v451, %v647
        %s650 = sld [smem:[#allocation6 + $0x11]]
        %v651 = vstv %s650
        %v652 = vmul.f32 %v624, %v651
        %v653 = vmul.f32 %v625, %v651
        %v654 = vadd.f32 %v454, %v652
        %v655 = vadd.f32 %v455, %v653
        %s656 = sld [smem:[#allocation6 + $0x15]]
        %v657 = vstv %s656
        %v658 = vmul.f32 %v624, %v657
        %v659 = vmul.f32 %v625, %v657
        %v660 = vadd.f32 %v458, %v658
        %v661 = vadd.f32 %v459, %v659
        %s662 = sld [smem:[#allocation6 + $0x19]]
        %v663 = vstv %s662
        %v664 = vmul.f32 %v624, %v663
        %v665 = vmul.f32 %v625, %v663
        %v666 = vadd.f32 %v462, %v664
        %v667 = vadd.f32 %v463, %v665
        %s668 = sld [smem:[#allocation6 + $0x1d]]
        %v669 = vstv %s668
        %v670 = vmul.f32 %v624, %v669
        %v671 = vmul.f32 %v625, %v669
        %v672 = vadd.f32 %v466, %v670
        %v673 = vadd.f32 %v467, %v671
        %s674 = scalar_lea.vmem %s271, 48
        %v675 = vld [vmem:[%s674] sm:$0xff]
        %v676 = vld [vmem:[%s674 + $0x8] sm:$0xff]
        %v677 = vld [vmem:[%s674 + $0x10] sm:$0x3]
        %s678 = sld [smem:[#allocation2 + $0x12]]
        %v679 = vstv %s678
        %v680 = vmul.f32 %v675, %v679
        %v681 = vmul.f32 %v676, %v679
        %s682 = sld [smem:[#allocation2 + $0x13]]
        %v683 = vstv %s682
        %v684 = vmul.f32 %v675, %v683
        %v685 = vmul.f32 %v676, %v683
        %688 = vrot.lane.b32.xlu0 %v684, 127
        %v689 = vpop.permute.xlu0 %688
        %690 = vrot.lane.b32.xlu0 %v685, 127
        %v691 = vpop.permute.xlu0 %690
        %v694 = vadd.f32 %v680, %v689
        %v695 = vadd.f32 %v681, %v691
        %s696 = sld [smem:[#allocation2 + $0x14]]
        %v697 = vstv %s696
        %v698 = vmul.f32 %v675, %v697
        %v699 = vmul.f32 %v676, %v697
        %702 = vrot.lane.b32.xlu0 %v698, 126
        %v703 = vpop.permute.xlu0 %702
        %704 = vrot.lane.b32.xlu0 %v699, 126
        %v705 = vpop.permute.xlu0 %704
        %v708 = vadd.f32 %v694, %v703
        %v709 = vadd.f32 %v695, %v705
        %s710 = sld [smem:[#allocation2 + $0x15]]
        %v711 = vstv %s710
        %v712 = vmul.f32 %v675, %v711
        %v713 = vmul.f32 %v676, %v711
        %v714 = vmul.f32 %v677, %v711
        %v718 = vrot.slane %v712, 1
        %v719 = vrot.slane %v713, 1
        %v720 = vsel %vm320, %v718, %v719
        %v721 = vrot.slane %v714, 1
        %v722 = vsel %vm320, %v719, %v721
        %v725 = vadd.f32 %v708, %v720
        %v726 = vadd.f32 %v709, %v722
        %s727 = sld [smem:[#allocation2 + $0x16]]
        %v728 = vstv %s727
        %v729 = vmul.f32 %v675, %v728
        %v730 = vmul.f32 %v676, %v728
        %v731 = vmul.f32 %v677, %v728
        %v735 = vrot.slane %v729, 1
        %v736 = vrot.slane %v730, 1
        %v737 = vsel %vm320, %v735, %v736
        %v738 = vrot.slane %v731, 1
        %v739 = vsel %vm320, %v736, %v738
        %740 = vrot.lane.b32.xlu0 %v737, 127
        %v741 = vpop.permute.xlu0 %740
        %742 = vrot.lane.b32.xlu0 %v739, 127
        %v743 = vpop.permute.xlu0 %742
        %v746 = vadd.f32 %v725, %v741
        %v747 = vadd.f32 %v726, %v743
        %s748 = sld [smem:[#allocation2 + $0x17]]
        %v749 = vstv %s748
        %v750 = vmul.f32 %v675, %v749
        %v751 = vmul.f32 %v676, %v749
        %v752 = vmul.f32 %v677, %v749
        %v756 = vrot.slane %v750, 1
        %v757 = vrot.slane %v751, 1
        %v758 = vsel %vm320, %v756, %v757
        %v759 = vrot.slane %v752, 1
        %v760 = vsel %vm320, %v757, %v759
        %761 = vrot.lane.b32.xlu0 %v758, 126
        %v762 = vpop.permute.xlu0 %761
        %763 = vrot.lane.b32.xlu0 %v760, 126
        %v764 = vpop.permute.xlu0 %763
        %v767 = vadd.f32 %v746, %v762
        %v768 = vadd.f32 %v747, %v764
        %s769 = sld [smem:[#allocation2 + $0x18]]
        %v770 = vstv %s769
        %v771 = vmul.f32 %v675, %v770
        %v772 = vmul.f32 %v676, %v770
        %v773 = vmul.f32 %v677, %v770
        %v777 = vrot.slane %v771, 2
        %v778 = vrot.slane %v772, 2
        %v779 = vsel %vm380, %v777, %v778
        %v780 = vrot.slane %v773, 2
        %v781 = vsel %vm380, %v778, %v780
        %v784 = vadd.f32 %v767, %v779
        %v785 = vadd.f32 %v768, %v781
        %s786 = sld [smem:[#allocation2 + $0x19]]
        %v787 = vstv %s786
        %v788 = vmul.f32 %v675, %v787
        %v789 = vmul.f32 %v676, %v787
        %v790 = vmul.f32 %v677, %v787
        %v794 = vrot.slane %v788, 2
        %v795 = vrot.slane %v789, 2
        %v796 = vsel %vm380, %v794, %v795
        %v797 = vrot.slane %v790, 2
        %v798 = vsel %vm380, %v795, %v797
        %799 = vrot.lane.b32.xlu0 %v796, 127
        %v800 = vpop.permute.xlu0 %799
        %801 = vrot.lane.b32.xlu0 %v798, 127
        %v802 = vpop.permute.xlu0 %801
        %v805 = vadd.f32 %v784, %v800
        %v806 = vadd.f32 %v785, %v802
        %s807 = sld [smem:[#allocation2 + $0x1a]]
        %v808 = vstv %s807
        %v809 = vmul.f32 %v675, %v808
        %v810 = vmul.f32 %v676, %v808
        %v811 = vmul.f32 %v677, %v808
        %v815 = vrot.slane %v809, 2
        %v816 = vrot.slane %v810, 2
        %v817 = vsel %vm380, %v815, %v816
        %v818 = vrot.slane %v811, 2
        %v819 = vsel %vm380, %v816, %v818
        %820 = vrot.lane.b32.xlu0 %v817, 126
        %v821 = vpop.permute.xlu0 %820
        %822 = vrot.lane.b32.xlu0 %v819, 126
        %v823 = vpop.permute.xlu0 %822
        %v826 = vadd.f32 %v805, %v821
        %v827 = vadd.f32 %v806, %v823
        %s828 = sld [smem:[#allocation4 + $0x2]]
        %v829 = vstv %s828
        %v830 = vadd.f32 %v826, %v829
        %v831 = vadd.f32 %v827, %v829
        %s832 = sld [smem:[#allocation6 + $0x2]]
        %v833 = vstv %s832
        %v834 = vmul.f32 %v830, %v833
        %v835 = vmul.f32 %v831, %v833
        %v836 = vadd.f32 %v630, %v834
        %v837 = vadd.f32 %v631, %v835
        %s838 = sld [smem:[#allocation6 + $0x6]]
        %v839 = vstv %s838
        %v840 = vmul.f32 %v830, %v839
        %v841 = vmul.f32 %v831, %v839
        %v842 = vadd.f32 %v636, %v840
        %v843 = vadd.f32 %v637, %v841
        %s844 = sld [smem:[#allocation6 + $0xa]]
        %v845 = vstv %s844
        %v846 = vmul.f32 %v830, %v845
        %v847 = vmul.f32 %v831, %v845
        %v848 = vadd.f32 %v642, %v846
        %v849 = vadd.f32 %v643, %v847
        %s850 = sld [smem:[#allocation6 + $0xe]]
        %v851 = vstv %s850
        %v852 = vmul.f32 %v830, %v851
        %v853 = vmul.f32 %v831, %v851
        %v854 = vadd.f32 %v648, %v852
        %v855 = vadd.f32 %v649, %v853
        %s856 = sld [smem:[#allocation6 + $0x12]]
        %v857 = vstv %s856
        %v858 = vmul.f32 %v830, %v857
        %v859 = vmul.f32 %v831, %v857
        %v860 = vadd.f32 %v654, %v858
        %v861 = vadd.f32 %v655, %v859
        %s862 = sld [smem:[#allocation6 + $0x16]]
        %v863 = vstv %s862
        %v864 = vmul.f32 %v830, %v863
        %v865 = vmul.f32 %v831, %v863
        %v866 = vadd.f32 %v660, %v864
        %v867 = vadd.f32 %v661, %v865
        %s868 = sld [smem:[#allocation6 + $0x1a]]
        %v869 = vstv %s868
        %v870 = vmul.f32 %v830, %v869
        %v871 = vmul.f32 %v831, %v869
        %v872 = vadd.f32 %v666, %v870
        %v873 = vadd.f32 %v667, %v871
        %s874 = sld [smem:[#allocation6 + $0x1e]]
        %v875 = vstv %s874
        %v876 = vmul.f32 %v830, %v875
        %v877 = vmul.f32 %v831, %v875
        %v878 = vadd.f32 %v672, %v876
        %v879 = vadd.f32 %v673, %v877
        %s880 = scalar_lea.vmem %s271, 72
        %v881 = vld [vmem:[%s880] sm:$0xff]
        %v882 = vld [vmem:[%s880 + $0x8] sm:$0xff]
        %v883 = vld [vmem:[%s880 + $0x10] sm:$0x3]
        %s884 = sld [smem:[#allocation2 + $0x1b]]
        %v885 = vstv %s884
        %v886 = vmul.f32 %v881, %v885
        %v887 = vmul.f32 %v882, %v885
        %s888 = sld [smem:[#allocation2 + $0x1c]]
        %v889 = vstv %s888
        %v890 = vmul.f32 %v881, %v889
        %v891 = vmul.f32 %v882, %v889
        %894 = vrot.lane.b32.xlu0 %v890, 127
        %v895 = vpop.permute.xlu0 %894
        %896 = vrot.lane.b32.xlu0 %v891, 127
        %v897 = vpop.permute.xlu0 %896
        %v900 = vadd.f32 %v886, %v895
        %v901 = vadd.f32 %v887, %v897
        %s902 = sld [smem:[#allocation2 + $0x1d]]
        %v903 = vstv %s902
        %v904 = vmul.f32 %v881, %v903
        %v905 = vmul.f32 %v882, %v903
        %908 = vrot.lane.b32.xlu0 %v904, 126
        %v909 = vpop.permute.xlu0 %908
        %910 = vrot.lane.b32.xlu0 %v905, 126
        %v911 = vpop.permute.xlu0 %910
        %v914 = vadd.f32 %v900, %v909
        %v915 = vadd.f32 %v901, %v911
        %s916 = sld [smem:[#allocation2 + $0x1e]]
        %v917 = vstv %s916
        %v918 = vmul.f32 %v881, %v917
        %v919 = vmul.f32 %v882, %v917
        %v920 = vmul.f32 %v883, %v917
        %v924 = vrot.slane %v918, 1
        %v925 = vrot.slane %v919, 1
        %v926 = vsel %vm320, %v924, %v925
        %v927 = vrot.slane %v920, 1
        %v928 = vsel %vm320, %v925, %v927
        %v931 = vadd.f32 %v914, %v926
        %v932 = vadd.f32 %v915, %v928
        %s933 = sld [smem:[#allocation2 + $0x1f]]
        %v934 = vstv %s933
        %v935 = vmul.f32 %v881, %v934
        %v936 = vmul.f32 %v882, %v934
        %v937 = vmul.f32 %v883, %v934
        %v941 = vrot.slane %v935, 1
        %v942 = vrot.slane %v936, 1
        %v943 = vsel %vm320, %v941, %v942
        %v944 = vrot.slane %v937, 1
        %v945 = vsel %vm320, %v942, %v944
        %946 = vrot.lane.b32.xlu0 %v943, 127
        %v947 = vpop.permute.xlu0 %946
        %948 = vrot.lane.b32.xlu0 %v945, 127
        %v949 = vpop.permute.xlu0 %948
        %v952 = vadd.f32 %v931, %v947
        %v953 = vadd.f32 %v932, %v949
        %s954 = sld [smem:[#allocation2 + $0x20]]
        %v955 = vstv %s954
        %v956 = vmul.f32 %v881, %v955
        %v957 = vmul.f32 %v882, %v955
        %v958 = vmul.f32 %v883, %v955
        %v962 = vrot.slane %v956, 1
        %v963 = vrot.slane %v957, 1
        %v964 = vsel %vm320, %v962, %v963
        %v965 = vrot.slane %v958, 1
        %v966 = vsel %vm320, %v963, %v965
        %967 = vrot.lane.b32.xlu0 %v964, 126
        %v968 = vpop.permute.xlu0 %967
        %969 = vrot.lane.b32.xlu0 %v966, 126
        %v970 = vpop.permute.xlu0 %969
        %v973 = vadd.f32 %v952, %v968
        %v974 = vadd.f32 %v953, %v970
        %s975 = sld [smem:[#allocation2 + $0x21]]
        %v976 = vstv %s975
        %v977 = vmul.f32 %v881, %v976
        %v978 = vmul.f32 %v882, %v976
        %v979 = vmul.f32 %v883, %v976
        %v983 = vrot.slane %v977, 2
        %v984 = vrot.slane %v978, 2
        %v985 = vsel %vm380, %v983, %v984
        %v986 = vrot.slane %v979, 2
        %v987 = vsel %vm380, %v984, %v986
        %v990 = vadd.f32 %v973, %v985
        %v991 = vadd.f32 %v974, %v987
        %s992 = sld [smem:[#allocation2 + $0x22]]
        %v993 = vstv %s992
        %v994 = vmul.f32 %v881, %v993
        %v995 = vmul.f32 %v882, %v993
        %v996 = vmul.f32 %v883, %v993
        %v1000 = vrot.slane %v994, 2
        %v1001 = vrot.slane %v995, 2
        %v1002 = vsel %vm380, %v1000, %v1001
        %v1003 = vrot.slane %v996, 2
        %v1004 = vsel %vm380, %v1001, %v1003
        %1005 = vrot.lane.b32.xlu0 %v1002, 127
        %v1006 = vpop.permute.xlu0 %1005
        %1007 = vrot.lane.b32.xlu0 %v1004, 127
        %v1008 = vpop.permute.xlu0 %1007
        %v1011 = vadd.f32 %v990, %v1006
        %v1012 = vadd.f32 %v991, %v1008
        %s1013 = sld [smem:[#allocation2 + $0x23]]
        %v1014 = vstv %s1013
        %v1015 = vmul.f32 %v881, %v1014
        %v1016 = vmul.f32 %v882, %v1014
        %v1017 = vmul.f32 %v883, %v1014
        %v1021 = vrot.slane %v1015, 2
        %v1022 = vrot.slane %v1016, 2
        %v1023 = vsel %vm380, %v1021, %v1022
        %v1024 = vrot.slane %v1017, 2
        %v1025 = vsel %vm380, %v1022, %v1024
        %1026 = vrot.lane.b32.xlu0 %v1023, 126
        %v1027 = vpop.permute.xlu0 %1026
        %1028 = vrot.lane.b32.xlu0 %v1025, 126
        %v1029 = vpop.permute.xlu0 %1028
        %v1032 = vadd.f32 %v1011, %v1027
        %v1033 = vadd.f32 %v1012, %v1029
        %s1034 = sld [smem:[#allocation4 + $0x3]]
        %v1035 = vstv %s1034
        %v1036 = vadd.f32 %v1032, %v1035
        %v1037 = vadd.f32 %v1033, %v1035
        %s1038 = sld [smem:[#allocation6 + $0x3]]
        %v1039 = vstv %s1038
        %v1040 = vmul.f32 %v1036, %v1039
        %v1041 = vmul.f32 %v1037, %v1039
        %v1042 = vadd.f32 %v836, %v1040
        %v1043 = vadd.f32 %v837, %v1041
        %s1044 = sld [smem:[#allocation6 + $0x7]]
        %v1045 = vstv %s1044
        %v1046 = vmul.f32 %v1036, %v1045
        %v1047 = vmul.f32 %v1037, %v1045
        %v1048 = vadd.f32 %v842, %v1046
        %v1049 = vadd.f32 %v843, %v1047
        %s1050 = sld [smem:[#allocation6 + $0xb]]
        %v1051 = vstv %s1050
        %v1052 = vmul.f32 %v1036, %v1051
        %v1053 = vmul.f32 %v1037, %v1051
        %v1054 = vadd.f32 %v848, %v1052
        %v1055 = vadd.f32 %v849, %v1053
        %s1056 = sld [smem:[#allocation6 + $0xf]]
        %v1057 = vstv %s1056
        %v1058 = vmul.f32 %v1036, %v1057
        %v1059 = vmul.f32 %v1037, %v1057
        %v1060 = vadd.f32 %v854, %v1058
        %v1061 = vadd.f32 %v855, %v1059
        %s1062 = sld [smem:[#allocation6 + $0x13]]
        %v1063 = vstv %s1062
        %v1064 = vmul.f32 %v1036, %v1063
        %v1065 = vmul.f32 %v1037, %v1063
        %v1066 = vadd.f32 %v860, %v1064
        %v1067 = vadd.f32 %v861, %v1065
        %s1068 = sld [smem:[#allocation6 + $0x17]]
        %v1069 = vstv %s1068
        %v1070 = vmul.f32 %v1036, %v1069
        %v1071 = vmul.f32 %v1037, %v1069
        %v1072 = vadd.f32 %v866, %v1070
        %v1073 = vadd.f32 %v867, %v1071
        %s1074 = sld [smem:[#allocation6 + $0x1b]]
        %v1075 = vstv %s1074
        %v1076 = vmul.f32 %v1036, %v1075
        %v1077 = vmul.f32 %v1037, %v1075
        %v1078 = vadd.f32 %v872, %v1076
        %v1079 = vadd.f32 %v873, %v1077
        %s1080 = sld [smem:[#allocation6 + $0x1f]]
        %v1081 = vstv %s1080
        %v1082 = vmul.f32 %v1036, %v1081
        %v1083 = vmul.f32 %v1037, %v1081
        %v1084 = vadd.f32 %v878, %v1082
        %v1085 = vadd.f32 %v879, %v1083
        %s1086 = sld [smem:[#allocation7]]
        %v1087 = vstv %s1086
        %v1088 = vadd.f32 %v1042, %v1087
        %v1089 = vadd.f32 %v1043, %v1087
        %s1090 = sld [smem:[#allocation7 + $0x1]]
        %v1091 = vstv %s1090
        %v1092 = vadd.f32 %v1048, %v1091
        %v1093 = vadd.f32 %v1049, %v1091
        %s1094 = sld [smem:[#allocation7 + $0x2]]
        %v1095 = vstv %s1094
        %v1096 = vadd.f32 %v1054, %v1095
        %v1097 = vadd.f32 %v1055, %v1095
        %s1098 = sld [smem:[#allocation7 + $0x3]]
        %v1099 = vstv %s1098
        %v1100 = vadd.f32 %v1060, %v1099
        %v1101 = vadd.f32 %v1061, %v1099
        %s1102 = sld [smem:[#allocation7 + $0x4]]
        %v1103 = vstv %s1102
        %v1104 = vadd.f32 %v1066, %v1103
        %v1105 = vadd.f32 %v1067, %v1103
        %s1106 = sld [smem:[#allocation7 + $0x5]]
        %v1107 = vstv %s1106
        %v1108 = vadd.f32 %v1072, %v1107
        %v1109 = vadd.f32 %v1073, %v1107
        %s1110 = sld [smem:[#allocation7 + $0x6]]
        %v1111 = vstv %s1110
        %v1112 = vadd.f32 %v1078, %v1111
        %v1113 = vadd.f32 %v1079, %v1111
        %s1114 = sld [smem:[#allocation7 + $0x7]]
        %v1115 = vstv %s1114
        %v1116 = vadd.f32 %v1084, %v1115
        %v1117 = vadd.f32 %v1085, %v1115
        %v1126 = vrot.slane %v1092, 7
        %vm1127 = vcmask 1041409
        %v1128 = vsel %vm1127, %v1126, %v1088
        %v1129 = vrot.slane %v1096, 6
        %vm1130 = vcmask 1042434
        %v1131 = vsel %vm1130, %v1129, %v1128
        %v1132 = vrot.slane %v1100, 5
        %vm1133 = vcmask 1043459
        %v1134 = vsel %vm1133, %v1132, %v1131
        %v1135 = vrot.slane %v1104, 4
        %vm1136 = vcmask 1044484
        %v1137 = vsel %vm1136, %v1135, %v1134
        %v1138 = vrot.slane %v1108, 3
        %vm1139 = vcmask 1045509
        %v1140 = vsel %vm1139, %v1138, %v1137
        %v1141 = vrot.slane %v1112, 2
        %vm1142 = vcmask 1046534
        %v1143 = vsel %vm1142, %v1141, %v1140
        %v1144 = vrot.slane %v1116, 1
        %vm1145 = vcmask 1047559
        %v1146 = vsel %vm1145, %v1144, %v1143
        %vm1148 = vcmask 130048
        %1149 = vst.msk [vmem:[%s276] sm:$0xff] %vm1148, %v1146
        %v1150 = vrot.slane %v1088, 1
        %v1151 = vsel %vm1127, %v1092, %v1150
        %v1152 = vrot.slane %v1096, 7
        %v1153 = vsel %vm1130, %v1152, %v1151
        %v1154 = vrot.slane %v1100, 6
        %v1155 = vsel %vm1133, %v1154, %v1153
        %v1156 = vrot.slane %v1104, 5
        %v1157 = vsel %vm1136, %v1156, %v1155
        %v1158 = vrot.slane %v1108, 4
        %v1159 = vsel %vm1139, %v1158, %v1157
        %v1160 = vrot.slane %v1112, 3
        %v1161 = vsel %vm1142, %v1160, %v1159
        %v1162 = vrot.slane %v1116, 2
        %v1163 = vsel %vm1145, %v1162, %v1161
        %1164 = vrot.lane.b32.xlu0 %v1163, 16
        %v1165 = vpop.permute.xlu0 %1164
        %vm1167 = vcmask 261248
        %1168 = vst.msk [vmem:[%s276] sm:$0xff] %vm1167, %v1165
        %v1169 = vrot.slane %v1088, 2
        %v1170 = vrot.slane %v1092, 1
        %v1171 = vsel %vm1127, %v1170, %v1169
        %v1172 = vsel %vm1130, %v1096, %v1171
        %v1173 = vrot.slane %v1100, 7
        %v1174 = vsel %vm1133, %v1173, %v1172
        %v1175 = vrot.slane %v1104, 6
        %v1176 = vsel %vm1136, %v1175, %v1174
        %v1177 = vrot.slane %v1108, 5
        %v1178 = vsel %vm1139, %v1177, %v1176
        %v1179 = vrot.slane %v1112, 4
        %v1180 = vsel %vm1142, %v1179, %v1178
        %v1181 = vrot.slane %v1116, 3
        %v1182 = vsel %vm1145, %v1181, %v1180
        %1183 = vrot.lane.b32.xlu0 %v1182, 32
        %v1184 = vpop.permute.xlu0 %1183
        %vm1186 = vcmask 392448
        %1187 = vst.msk [vmem:[%s276] sm:$0xff] %vm1186, %v1184
        %v1188 = vrot.slane %v1088, 3
        %v1189 = vrot.slane %v1092, 2
        %v1190 = vsel %vm1127, %v1189, %v1188
        %v1191 = vrot.slane %v1096, 1
        %v1192 = vsel %vm1130, %v1191, %v1190
        %v1193 = vsel %vm1133, %v1100, %v1192
        %v1194 = vrot.slane %v1104, 7
        %v1195 = vsel %vm1136, %v1194, %v1193
        %v1196 = vrot.slane %v1108, 6
        %v1197 = vsel %vm1139, %v1196, %v1195
        %v1198 = vrot.slane %v1112, 5
        %v1199 = vsel %vm1142, %v1198, %v1197
        %v1200 = vrot.slane %v1116, 4
        %v1201 = vsel %vm1145, %v1200, %v1199
        %1202 = vrot.lane.b32.xlu0 %v1201, 48
        %v1203 = vpop.permute.xlu0 %1202
        %vm1205 = vcmask 523648
        %1206 = vst.msk [vmem:[%s276] sm:$0xff] %vm1205, %v1203
        %v1207 = vrot.slane %v1088, 4
        %v1208 = vrot.slane %v1092, 3
        %v1209 = vsel %vm1127, %v1208, %v1207
        %v1210 = vrot.slane %v1096, 2
        %v1211 = vsel %vm1130, %v1210, %v1209
        %v1212 = vrot.slane %v1100, 1
        %v1213 = vsel %vm1133, %v1212, %v1211
        %v1214 = vsel %vm1136, %v1104, %v1213
        %v1215 = vrot.slane %v1108, 7
        %v1216 = vsel %vm1139, %v1215, %v1214
        %v1217 = vrot.slane %v1112, 6
        %v1218 = vsel %vm1142, %v1217, %v1216
        %v1219 = vrot.slane %v1116, 5
        %v1220 = vsel %vm1145, %v1219, %v1218
        %1221 = vrot.lane.b32.xlu0 %v1220, 64
        %v1222 = vpop.permute.xlu0 %1221
        %vm1224 = vcmask 654848
        %1225 = vst.msk [vmem:[%s276] sm:$0xff] %vm1224, %v1222
        %v1226 = vrot.slane %v1088, 5
        %v1227 = vrot.slane %v1092, 4
        %v1228 = vsel %vm1127, %v1227, %v1226
        %v1229 = vrot.slane %v1096, 3
        %v1230 = vsel %vm1130, %v1229, %v1228
        %v1231 = vrot.slane %v1100, 2
        %v1232 = vsel %vm1133, %v1231, %v1230
        %v1233 = vrot.slane %v1104, 1
        %v1234 = vsel %vm1136, %v1233, %v1232
        %v1235 = vsel %vm1139, %v1108, %v1234
        %v1236 = vrot.slane %v1112, 7
        %v1237 = vsel %vm1142, %v1236, %v1235
        %v1238 = vrot.slane %v1116, 6
        %v1239 = vsel %vm1145, %v1238, %v1237
        %1240 = vrot.lane.b32.xlu0 %v1239, 80
        %v1241 = vpop.permute.xlu0 %1240
        %vm1243 = vcmask 786048
        %1244 = vst.msk [vmem:[%s276] sm:$0xff] %vm1243, %v1241
        %v1245 = vrot.slane %v1088, 6
        %v1246 = vrot.slane %v1092, 5
        %v1247 = vsel %vm1127, %v1246, %v1245
        %v1248 = vrot.slane %v1096, 4
        %v1249 = vsel %vm1130, %v1248, %v1247
        %v1250 = vrot.slane %v1100, 3
        %v1251 = vsel %vm1133, %v1250, %v1249
        %v1252 = vrot.slane %v1104, 2
        %v1253 = vsel %vm1136, %v1252, %v1251
        %v1254 = vrot.slane %v1108, 1
        %v1255 = vsel %vm1139, %v1254, %v1253
        %v1256 = vsel %vm1142, %v1112, %v1255
        %v1257 = vrot.slane %v1116, 7
        %v1258 = vsel %vm1145, %v1257, %v1256
        %1259 = vrot.lane.b32.xlu0 %v1258, 96
        %v1260 = vpop.permute.xlu0 %1259
        %vm1262 = vcmask 917248
        %1263 = vst.msk [vmem:[%s276] sm:$0xff] %vm1262, %v1260
        %v1264 = vrot.slane %v1088, 7
        %v1265 = vrot.slane %v1092, 6
        %v1266 = vsel %vm1127, %v1265, %v1264
        %v1267 = vrot.slane %v1096, 5
        %v1268 = vsel %vm1130, %v1267, %v1266
        %v1269 = vrot.slane %v1100, 4
        %v1270 = vsel %vm1133, %v1269, %v1268
        %v1271 = vrot.slane %v1104, 3
        %v1272 = vsel %vm1136, %v1271, %v1270
        %v1273 = vrot.slane %v1108, 2
        %v1274 = vsel %vm1139, %v1273, %v1272
        %v1275 = vrot.slane %v1112, 1
        %v1276 = vsel %vm1142, %v1275, %v1274
        %v1277 = vsel %vm1145, %v1116, %v1276
        %1278 = vrot.lane.b32.xlu0 %v1277, 112
        %v1279 = vpop.permute.xlu0 %1278
        %vm1281 = vcmask 1048448
        %1282 = vst.msk [vmem:[%s276] sm:$0xff] %vm1281, %v1279
        %v1291 = vrot.slane %v1093, 7
        %v1292 = vsel %vm1127, %v1291, %v1089
        %v1293 = vrot.slane %v1097, 6
        %v1294 = vsel %vm1130, %v1293, %v1292
        %v1295 = vrot.slane %v1101, 5
        %v1296 = vsel %vm1133, %v1295, %v1294
        %v1297 = vrot.slane %v1105, 4
        %v1298 = vsel %vm1136, %v1297, %v1296
        %v1299 = vrot.slane %v1109, 3
        %v1300 = vsel %vm1139, %v1299, %v1298
        %v1301 = vrot.slane %v1113, 2
        %v1302 = vsel %vm1142, %v1301, %v1300
        %v1303 = vrot.slane %v1117, 1
        %v1304 = vsel %vm1145, %v1303, %v1302
        %1306 = vst.msk [vmem:[%s276 + $0x8] sm:$0xff] %vm1148, %v1304
        %v1307 = vrot.slane %v1089, 1
        %v1308 = vsel %vm1127, %v1093, %v1307
        %v1309 = vrot.slane %v1097, 7
        %v1310 = vsel %vm1130, %v1309, %v1308
        %v1311 = vrot.slane %v1101, 6
        %v1312 = vsel %vm1133, %v1311, %v1310
        %v1313 = vrot.slane %v1105, 5
        %v1314 = vsel %vm1136, %v1313, %v1312
        %v1315 = vrot.slane %v1109, 4
        %v1316 = vsel %vm1139, %v1315, %v1314
        %v1317 = vrot.slane %v1113, 3
        %v1318 = vsel %vm1142, %v1317, %v1316
        %v1319 = vrot.slane %v1117, 2
        %v1320 = vsel %vm1145, %v1319, %v1318
        %1321 = vrot.lane.b32.xlu0 %v1320, 16
        %v1322 = vpop.permute.xlu0 %1321
        %1324 = vst.msk [vmem:[%s276 + $0x8] sm:$0xff] %vm1167, %v1322
        %v1325 = vrot.slane %v1089, 2
        %v1326 = vrot.slane %v1093, 1
        %v1327 = vsel %vm1127, %v1326, %v1325
        %v1328 = vsel %vm1130, %v1097, %v1327
        %v1329 = vrot.slane %v1101, 7
        %v1330 = vsel %vm1133, %v1329, %v1328
        %v1331 = vrot.slane %v1105, 6
        %v1332 = vsel %vm1136, %v1331, %v1330
        %v1333 = vrot.slane %v1109, 5
        %v1334 = vsel %vm1139, %v1333, %v1332
        %v1335 = vrot.slane %v1113, 4
        %v1336 = vsel %vm1142, %v1335, %v1334
        %v1337 = vrot.slane %v1117, 3
        %v1338 = vsel %vm1145, %v1337, %v1336
        %1339 = vrot.lane.b32.xlu0 %v1338, 32
        %v1340 = vpop.permute.xlu0 %1339
        %1342 = vst.msk [vmem:[%s276 + $0x8] sm:$0xff] %vm1186, %v1340
        %v1343 = vrot.slane %v1089, 3
        %v1344 = vrot.slane %v1093, 2
        %v1345 = vsel %vm1127, %v1344, %v1343
        %v1346 = vrot.slane %v1097, 1
        %v1347 = vsel %vm1130, %v1346, %v1345
        %v1348 = vsel %vm1133, %v1101, %v1347
        %v1349 = vrot.slane %v1105, 7
        %v1350 = vsel %vm1136, %v1349, %v1348
        %v1351 = vrot.slane %v1109, 6
        %v1352 = vsel %vm1139, %v1351, %v1350
        %v1353 = vrot.slane %v1113, 5
        %v1354 = vsel %vm1142, %v1353, %v1352
        %v1355 = vrot.slane %v1117, 4
        %v1356 = vsel %vm1145, %v1355, %v1354
        %1357 = vrot.lane.b32.xlu0 %v1356, 48
        %v1358 = vpop.permute.xlu0 %1357
        %1360 = vst.msk [vmem:[%s276 + $0x8] sm:$0xff] %vm1205, %v1358
        %v1361 = vrot.slane %v1089, 4
        %v1362 = vrot.slane %v1093, 3
        %v1363 = vsel %vm1127, %v1362, %v1361
        %v1364 = vrot.slane %v1097, 2
        %v1365 = vsel %vm1130, %v1364, %v1363
        %v1366 = vrot.slane %v1101, 1
        %v1367 = vsel %vm1133, %v1366, %v1365
        %v1368 = vsel %vm1136, %v1105, %v1367
        %v1369 = vrot.slane %v1109, 7
        %v1370 = vsel %vm1139, %v1369, %v1368
        %v1371 = vrot.slane %v1113, 6
        %v1372 = vsel %vm1142, %v1371, %v1370
        %v1373 = vrot.slane %v1117, 5
        %v1374 = vsel %vm1145, %v1373, %v1372
        %1375 = vrot.lane.b32.xlu0 %v1374, 64
        %v1376 = vpop.permute.xlu0 %1375
        %1378 = vst.msk [vmem:[%s276 + $0x8] sm:$0xff] %vm1224, %v1376
        %v1379 = vrot.slane %v1089, 5
        %v1380 = vrot.slane %v1093, 4
        %v1381 = vsel %vm1127, %v1380, %v1379
        %v1382 = vrot.slane %v1097, 3
        %v1383 = vsel %vm1130, %v1382, %v1381
        %v1384 = vrot.slane %v1101, 2
        %v1385 = vsel %vm1133, %v1384, %v1383
        %v1386 = vrot.slane %v1105, 1
        %v1387 = vsel %vm1136, %v1386, %v1385
        %v1388 = vsel %vm1139, %v1109, %v1387
        %v1389 = vrot.slane %v1113, 7
        %v1390 = vsel %vm1142, %v1389, %v1388
        %v1391 = vrot.slane %v1117, 6
        %v1392 = vsel %vm1145, %v1391, %v1390
        %1393 = vrot.lane.b32.xlu0 %v1392, 80
        %v1394 = vpop.permute.xlu0 %1393
        %1396 = vst.msk [vmem:[%s276 + $0x8] sm:$0xff] %vm1243, %v1394
        %v1397 = vrot.slane %v1089, 6
        %v1398 = vrot.slane %v1093, 5
        %v1399 = vsel %vm1127, %v1398, %v1397
        %v1400 = vrot.slane %v1097, 4
        %v1401 = vsel %vm1130, %v1400, %v1399
        %v1402 = vrot.slane %v1101, 3
        %v1403 = vsel %vm1133, %v1402, %v1401
        %v1404 = vrot.slane %v1105, 2
        %v1405 = vsel %vm1136, %v1404, %v1403
        %v1406 = vrot.slane %v1109, 1
        %v1407 = vsel %vm1139, %v1406, %v1405
        %v1408 = vsel %vm1142, %v1113, %v1407
        %v1409 = vrot.slane %v1117, 7
        %v1410 = vsel %vm1145, %v1409, %v1408
        %1411 = vrot.lane.b32.xlu0 %v1410, 96
        %v1412 = vpop.permute.xlu0 %1411
        %1414 = vst.msk [vmem:[%s276 + $0x8] sm:$0xff] %vm1262, %v1412
        %v1415 = vrot.slane %v1089, 7
        %v1416 = vrot.slane %v1093, 6
        %v1417 = vsel %vm1127, %v1416, %v1415
        %v1418 = vrot.slane %v1097, 5
        %v1419 = vsel %vm1130, %v1418, %v1417
        %v1420 = vrot.slane %v1101, 4
        %v1421 = vsel %vm1133, %v1420, %v1419
        %v1422 = vrot.slane %v1105, 3
        %v1423 = vsel %vm1136, %v1422, %v1421
        %v1424 = vrot.slane %v1109, 2
        %v1425 = vsel %vm1139, %v1424, %v1423
        %v1426 = vrot.slane %v1113, 1
        %v1427 = vsel %vm1142, %v1426, %v1425
        %v1428 = vsel %vm1145, %v1117, %v1427
        %1429 = vrot.lane.b32.xlu0 %v1428, 112
        %v1430 = vpop.permute.xlu0 %1429
        %1432 = vst.msk [vmem:[%s276 + $0x8] sm:$0xff] %vm1281, %v1430
        %p1433 = scmp.lt.s32.totalorder %s19, 1
        %s1434 = scalar_select %p1433, %s19, 1
        %s1435 = smul.addr %s1434, 2
        %s1436 = smul.addr %s1435, 8
        %s1437 = scalar_lea.vmem %s5, %s1436
        // Predicated region
        $region57: #{separable_conv2d.1} parent=39 // pred_check
          %p1438 = pneg %p147
        $region58: #{separable_conv2d.1} parent=39 // pred_check_branch
          %1440 = sbr.rel (%p1438) target = $region60
        $region59: #{separable_conv2d.1} parent=39 // pred_region
          _
        $region60: #{separable_conv2d.1} parent=39 // pred_fallthru
          _
      $region40: #{separable_conv2d.1} parent=5 // pred_fallthru
        _
      %p1441 = scmp.le.s32.totalorder 2, %s14
      // Predicated region
      $region61: #{separable_conv2d.1} parent=5 // pred_check
        %p1442 = pneg %p1441
      $region62: #{separable_conv2d.1} parent=5 // pred_check_branch
        %1444 = sbr.rel (%p1442) target = $region64
      $region63: #{separable_conv2d.1} parent=5 // pred_region
        %s1445 = ssub.s32 %s14, 2
        // Predicated region
        $region65: #{separable_conv2d.1} parent=63 // pred_check
          %p1446 = pneg %p153
        $region66: #{separable_conv2d.1} parent=63 // pred_check_branch
          %1448 = sbr.rel (%p1446) target = $region68
        $region67: #{separable_conv2d.1} parent=63 // pred_region
          %p1449 = scmp.lt.s32.totalorder %s20, 1
          %s1450 = scalar_select %p1449, %s20, 1
          %s1451 = smul.addr %s1450, 2
          %s1452 = smul.addr %s1451, 8
          %s1453 = scalar_lea.vmem %s5, %s1452
        $region68: #{separable_conv2d.1} parent=63 // pred_fallthru
          _
      $region64: #{separable_conv2d.1} parent=5 // pred_fallthru
        _
    $region6: #{separable_conv2d.1} parent=1 // loop_footer
      %s18 = sadd.s32 1, %s14
    $region7: #{separable_conv2d.1} parent=1 // loop_footer_branch
      %13 = sbr.rel target = $region3
    $region8: #{separable_conv2d.1} parent=1 // loop_exit
      _
    %1454 = vsyncpa [#allocation3], 1
    %s1455 = scalar_lea.sflag [#allocation3], 1
    %1456 = vsyncpa %s1455, 1
    %1457 = vsyncpa [#allocation5], 1
    %1458 = vsyncpa [#allocation8], 1

</llo_original>
